<compile_context>
chip_gen: v7x
topology: tpu7x:2x2x1
jax: 0.10.0
libtpu: 0.0.40
codegen_flags: <defaults>
</compile_context>

<pallas_src>
from functools import partial

import jax
import jax.numpy as jnp
from jax.experimental import pallas as pl
from jax.experimental.pallas import tpu as pltpu


def _sigmoid(x):
    # Exact identity; keeps the divide off the path (tanh goes to the EUP slot).
    return 0.5 + 0.5 * jnp.tanh(0.5 * x)


def lstm_kernel(x_ref, t_ref,
                w_t2v_ref, b_t2v_ref,
                w_ih_ref, w_hh_ref, b_g_ref,
                w_fc_ref, b_fc_ref,
                out_ref, h_hist_ref, *, batch):
    TB, D = x_ref.shape            # rows are time-major: row index = t*B + b
    B = batch
    T = TB // B
    H = w_hh_ref.shape[0]

    w_t2v = w_t2v_ref[...]         # (1, D)
    b_t2v = b_t2v_ref[...]         # (1, D)
    w_ih = w_ih_ref[...]           # (D, 4H)
    w_hh = w_hh_ref[...]           # (H, 4H)
    b_g = b_g_ref[...]             # (1, 4H)
    w_fc = w_fc_ref[...]           # (H, O)
    b_fc = b_fc_ref[...]           # (1, O)

    # ---- Hoisted Time2Vec + input projection for ALL (t, b) rows at once.
    x_all = x_ref[...]             # (T*B, D)
    tau_all = t_ref[...]           # (T*B, 1)
    tv = tau_all * w_t2v + b_t2v                                   # (T*B, D)
    col = jax.lax.broadcasted_iota(jnp.int32, (TB, D), 1)
    tv = jnp.where(col < D - 1, jnp.sin(tv), tv)                   # sin on first D-1 feats
    x_aug = x_all + 0.002 * tv                                     # torch.add(inputs, 0.002*t2v)
    gx_all = jnp.dot(x_aug, w_ih,
                     preferred_element_type=jnp.float32) + b_g     # (T*B, 4H)

    # ---- Precomputed gate-activation masks: ONE full-tile tanh per step.
    # sigmoid(x) = 0.5 + 0.5*tanh(0.5*x)   for the i/f/o columns
    # tanh(x)                              for the g columns
    col4 = jax.lax.broadcasted_iota(jnp.int32, (B, 4 * H), 1)
    is_g = jnp.logical_and(col4 >= 2 * H, col4 < 3 * H)
    half = jnp.where(is_g, 1.0, 0.5).astype(jnp.float32)           # pre & post scale
    shift = jnp.where(is_g, 0.0, 0.5).astype(jnp.float32)          # post shift

    # ---- Serial LSTM recurrence (PyTorch gate order i, f, g, o); h0 = c0 = 0.
    h = jnp.zeros((B, H), jnp.float32)
    c = jnp.zeros((B, H), jnp.float32)
    for t in range(T):
        g_x = gx_all[t * B:(t + 1) * B, :]                         # contiguous (B, 4H) slice
        gates = g_x + jnp.dot(h, w_hh, preferred_element_type=jnp.float32)
        acts = jnp.tanh(gates * half) * half + shift               # i,f,o=sigmoid; g=tanh
        i = acts[:, 0:H]
        f = acts[:, H:2 * H]
        g = acts[:, 2 * H:3 * H]
        o = acts[:, 3 * H:4 * H]
        c = f * c + i * g
        h = o * jnp.tanh(c)
        h_hist_ref[pl.ds(t * B, B), :] = h                         # rows t*B .. t*B+B-1

    # ---- Single fc head matmul over all timesteps, packed (out, sigmoid(out)) output.
    out_all = jnp.dot(h_hist_ref[...], w_fc,
                      preferred_element_type=jnp.float32) + b_fc   # (T*B, O)
    out_ref[0] = out_all
    out_ref[1] = _sigmoid(out_all)


@jax.jit
def lstm_forward(inputs, times, params):
    """inputs: (B, T, D) float32, times: (B, T, 1) float32 (PyTorch batch_first layout)."""
    B, T, D = inputs.shape
    H = params["w_hh_T"].shape[0]
    O = params["w_fc_T"].shape[1]

    # Time-major flattening (row index = t*B + b): tiny XLA ops, off the kernel path.
    x_tm = jnp.transpose(inputs, (1, 0, 2)).reshape(T * B, D)
    t_tm = jnp.transpose(times, (1, 0, 2)).reshape(T * B, 1)

    vmem = pl.BlockSpec(memory_space=pltpu.MemorySpace.VMEM)   # whole array resident in VMEM
    packed = pl.pallas_call(
        partial(lstm_kernel, batch=B),
        out_shape=jax.ShapeDtypeStruct((2, T * B, O), jnp.float32),   # [0]=out, [1]=sigmoid(out)
        in_specs=[vmem] * 9,
        out_specs=vmem,
        scratch_shapes=[pltpu.VMEM((T * B, H), jnp.float32)],         # h history
    )(x_tm, t_tm,
      params["w_t2v"], params["b_t2v"],
      params["w_ih_T"], params["w_hh_T"], params["b_gates"],
      params["w_fc_T"], params["b_fc"])

    packed = packed.reshape(2, T, B, O)
    out = jnp.transpose(packed[0], (1, 0, 2))                         # (B, T, O)
    sig = jnp.transpose(packed[1], (1, 0, 2))                         # (B, T, O)
    return sig, out


def reference_forward(inputs, times, params):
    """Pure-JAX reference with identical semantics (for correctness check)."""
    D = inputs.shape[-1]
    H = params["w_hh_T"].shape[0]
    B = inputs.shape[0]

    tv = times * params["w_t2v"] + params["b_t2v"]          # (B, T, D)
    mask = jnp.arange(D) < D - 1
    tv = jnp.where(mask, jnp.sin(tv), tv)
    x = inputs + 0.002 * tv

    def sigmoid(v):
        return 1.0 / (1.0 + jnp.exp(-v))

    def step(carry, xt):
        h, c = carry
        gates = xt @ params["w_ih_T"] + h @ params["w_hh_T"] + params["b_gates"]
        i = sigmoid(gates[:, :H])
        f = sigmoid(gates[:, H:2 * H])
        g = jnp.tanh(gates[:, 2 * H:3 * H])
        o = sigmoid(gates[:, 3 * H:4 * H])
        c = f * c + i * g
        h = o * jnp.tanh(c)
        return (h, c), h

    h0 = jnp.zeros((B, H), jnp.float32)
    c0 = jnp.zeros((B, H), jnp.float32)
    _, hs = jax.lax.scan(step, (h0, c0), jnp.transpose(x, (1, 0, 2)))
    lstm_out = jnp.transpose(hs, (1, 0, 2))                  # (B, T, H)
    out = lstm_out @ params["w_fc_T"] + params["b_fc"]
    return sigmoid(out), out


def make_params(key, D, H, O):
    ks = jax.random.split(key, 10)
    scale = 1.0 / jnp.sqrt(jnp.float32(H))
    # Time2Vec: w (1, D-1) sine part, w0 (1, 1) linear part -> packed as (1, D).
    w = jax.random.normal(ks[0], (1, D - 1), jnp.float32)
    b = jax.random.normal(ks[1], (1, D - 1), jnp.float32)
    w0 = jax.random.normal(ks[2], (1, 1), jnp.float32)
    b0 = jax.random.normal(ks[3], (1, 1), jnp.float32)
    # LSTM weights (PyTorch shapes (4H, D)/(4H, H); stored transposed for x @ W^T).
    w_ih = jax.random.uniform(ks[4], (4 * H, D), jnp.float32, -scale, scale)
    w_hh = jax.random.uniform(ks[5], (4 * H, H), jnp.float32, -scale, scale)
    b_ih = jax.random.uniform(ks[6], (4 * H,), jnp.float32, -scale, scale)
    b_hh = jax.random.uniform(ks[7], (4 * H,), jnp.float32, -scale, scale)
    # fc: Linear(H, O)
    w_fc = jax.random.uniform(ks[8], (O, H), jnp.float32, -scale, scale)
    b_fc = jax.random.uniform(ks[9], (O,), jnp.float32, -scale, scale)
    return {
        "w_t2v": jnp.concatenate([w, w0], axis=-1),          # (1, D)
        "b_t2v": jnp.concatenate([b, b0], axis=-1),          # (1, D)
        "w_ih_T": jnp.transpose(w_ih),                        # (D, 4H)
        "w_hh_T": jnp.transpose(w_hh),                        # (H, 4H)
        "b_gates": (b_ih + b_hh).reshape(1, 4 * H),           # (1, 4H)
        "w_fc_T": jnp.transpose(w_fc),                        # (H, O)
        "b_fc": b_fc.reshape(1, O),                           # (1, O)
    }


if __name__ == "__main__":
    B, T, D, H, O = 2, 8, 16, 32, 4   # batch, seq, input_dim, hidden_dim, output_dim

    key = jax.random.PRNGKey(0)
    k_in, k_tm, k_par = jax.random.split(key, 3)
    inputs = jax.random.normal(k_in, (B, T, D), jnp.float32)
    times = jax.random.normal(k_tm, (B, T, 1), jnp.float32)
    params = make_params(k_par, D, H, O)

    sig, out = jax.block_until_ready(lstm_forward(inputs, times, params))
    sig_expect, out_expect = jax.block_until_ready(reference_forward(inputs, times, params))

    assert sig.shape == (B, T, O) and out.shape == (B, T, O)
    assert float(jnp.max(jnp.abs(out - out_expect))) < 1e-4
    assert float(jnp.max(jnp.abs(sig - sig_expect))) < 1e-4
    print("KERNEL_OK")
</pallas_src>

<mosaic_0001>
module attributes {stable_mosaic.version = 11 : i64} {
  func.func @lstm_kernel(%arg0: memref<16x16xf32, #tpu.memory_space<vmem>>, %arg1: memref<16x1xf32, #tpu.memory_space<vmem>>, %arg2: memref<1x16xf32, #tpu.memory_space<vmem>>, %arg3: memref<1x16xf32, #tpu.memory_space<vmem>>, %arg4: memref<16x128xf32, #tpu.memory_space<vmem>>, %arg5: memref<32x128xf32, #tpu.memory_space<vmem>>, %arg6: memref<1x128xf32, #tpu.memory_space<vmem>>, %arg7: memref<32x4xf32, #tpu.memory_space<vmem>>, %arg8: memref<1x4xf32, #tpu.memory_space<vmem>>, %arg9: memref<2x16x4xf32, #tpu.memory_space<vmem>>, %arg10: memref<16x32xf32, #tpu.memory_space<vmem>>) attributes {dimension_semantics = [], scalar_prefetch = 0 : i64, scratch_operands = 1 : i64, tpu.core_type = #tpu.core_type<tc>} {
    %c0 = arith.constant 0 : index
    %c0_0 = arith.constant 0 : index
    %0 = vector.load %arg2[%c0, %c0_0] : memref<1x16xf32, #tpu.memory_space<vmem>>, vector<1x16xf32>
    %c0_1 = arith.constant 0 : index
    %c0_2 = arith.constant 0 : index
    %1 = vector.load %arg3[%c0_1, %c0_2] : memref<1x16xf32, #tpu.memory_space<vmem>>, vector<1x16xf32>
    %c0_3 = arith.constant 0 : index
    %c0_4 = arith.constant 0 : index
    %2 = vector.load %arg4[%c0_3, %c0_4] : memref<16x128xf32, #tpu.memory_space<vmem>>, vector<16x128xf32>
    %c0_5 = arith.constant 0 : index
    %c0_6 = arith.constant 0 : index
    %3 = vector.load %arg5[%c0_5, %c0_6] : memref<32x128xf32, #tpu.memory_space<vmem>>, vector<32x128xf32>
    %c0_7 = arith.constant 0 : index
    %c0_8 = arith.constant 0 : index
    %4 = vector.load %arg6[%c0_7, %c0_8] : memref<1x128xf32, #tpu.memory_space<vmem>>, vector<1x128xf32>
    %c0_9 = arith.constant 0 : index
    %c0_10 = arith.constant 0 : index
    %5 = vector.load %arg7[%c0_9, %c0_10] : memref<32x4xf32, #tpu.memory_space<vmem>>, vector<32x4xf32>
    %c0_11 = arith.constant 0 : index
    %c0_12 = arith.constant 0 : index
    %6 = vector.load %arg8[%c0_11, %c0_12] : memref<1x4xf32, #tpu.memory_space<vmem>>, vector<1x4xf32>
    %c0_13 = arith.constant 0 : index
    %c0_14 = arith.constant 0 : index
    %7 = vector.load %arg0[%c0_13, %c0_14] : memref<16x16xf32, #tpu.memory_space<vmem>>, vector<16x16xf32>
    %c0_15 = arith.constant 0 : index
    %c0_16 = arith.constant 0 : index
    %8 = vector.load %arg1[%c0_15, %c0_16] : memref<16x1xf32, #tpu.memory_space<vmem>>, vector<16x1xf32>
    %9 = vector.broadcast %8 : vector<16x1xf32> to vector<16x16xf32>
    %10 = vector.broadcast %0 : vector<1x16xf32> to vector<16x16xf32>
    %11 = arith.mulf %9, %10 : vector<16x16xf32>
    %12 = vector.broadcast %1 : vector<1x16xf32> to vector<16x16xf32>
    %13 = arith.addf %11, %12 : vector<16x16xf32>
    %14 = tpu.iota {dimensions = array<i32: 1>} : vector<16x16xi32>
    %c15_i32 = arith.constant 15 : i32
    %15 = vector.broadcast %c15_i32 : i32 to vector<16x16xi32>
    %16 = arith.cmpi slt, %14, %15 : vector<16x16xi32>
    %17 = math.sin %13 : vector<16x16xf32>
    %18 = arith.select %16, %17, %13 : vector<16x16xi1>, vector<16x16xf32>
    %cst = arith.constant 2.000000e-03 : f32
    %19 = vector.broadcast %cst : f32 to vector<16x16xf32>
    %20 = arith.mulf %19, %18 : vector<16x16xf32>
    %21 = arith.addf %7, %20 : vector<16x16xf32>
    %cst_17 = arith.constant dense<0.000000e+00> : vector<16x128xf32>
    %22 = tpu.matmul %21, %2, %cst_17 {dimension_numbers = #tpu.dot_dimension_numbers<[1], [0], [0], [1], [0, 0, 1, 1], [], []>} : vector<16x16xf32>, vector<16x128xf32>, vector<16x128xf32> -> vector<16x128xf32>
    %23 = vector.broadcast %4 : vector<1x128xf32> to vector<16x128xf32>
    %24 = arith.addf %22, %23 : vector<16x128xf32>
    %25 = tpu.iota {dimensions = array<i32: 1>} : vector<2x128xi32>
    %c64_i32 = arith.constant 64 : i32
    %26 = vector.broadcast %c64_i32 : i32 to vector<2x128xi32>
    %27 = arith.cmpi sge, %25, %26 : vector<2x128xi32>
    %c96_i32 = arith.constant 96 : i32
    %28 = vector.broadcast %c96_i32 : i32 to vector<2x128xi32>
    %29 = arith.cmpi slt, %25, %28 : vector<2x128xi32>
    %30 = arith.andi %27, %29 : vector<2x128xi1>
    %cst_18 = arith.constant 1.000000e+00 : f32
    %cst_19 = arith.constant 5.000000e-01 : f32
    %31 = vector.broadcast %cst_18 : f32 to vector<2x128xf32>
    %32 = vector.broadcast %cst_19 : f32 to vector<2x128xf32>
    %33 = arith.select %30, %31, %32 : vector<2x128xi1>, vector<2x128xf32>
    %cst_20 = arith.constant 0.000000e+00 : f32
    %cst_21 = arith.constant 5.000000e-01 : f32
    %34 = vector.broadcast %cst_20 : f32 to vector<2x128xf32>
    %35 = vector.broadcast %cst_21 : f32 to vector<2x128xf32>
    %36 = arith.select %30, %34, %35 : vector<2x128xi1>, vector<2x128xf32>
    %cst_22 = arith.constant 0.000000e+00 : f32
    %37 = vector.broadcast %cst_22 : f32 to vector<2x32xf32>
    %cst_23 = arith.constant 0.000000e+00 : f32
    %38 = vector.broadcast %cst_23 : f32 to vector<2x32xf32>
    %39 = vector.extract_strided_slice %24 {offsets = [0, 0], sizes = [2, 128], strides = [1, 1]} : vector<16x128xf32> to vector<2x128xf32>
    %cst_24 = arith.constant dense<0.000000e+00> : vector<2x128xf32>
    %40 = tpu.matmul %37, %3, %cst_24 {dimension_numbers = #tpu.dot_dimension_numbers<[1], [0], [0], [1], [0, 0, 1, 1], [], []>} : vector<2x32xf32>, vector<32x128xf32>, vector<2x128xf32> -> vector<2x128xf32>
    %41 = arith.addf %39, %40 : vector<2x128xf32>
    %42 = arith.mulf %41, %33 : vector<2x128xf32>
    %43 = math.tanh %42 : vector<2x128xf32>
    %44 = arith.mulf %43, %33 : vector<2x128xf32>
    %45 = arith.addf %44, %36 : vector<2x128xf32>
    %46 = vector.extract_strided_slice %45 {offsets = [0, 0], sizes = [2, 32], strides = [1, 1]} : vector<2x128xf32> to vector<2x32xf32>
    %47 = vector.extract_strided_slice %45 {offsets = [0, 32], sizes = [2, 32], strides = [1, 1]} : vector<2x128xf32> to vector<2x32xf32>
    %48 = vector.extract_strided_slice %45 {offsets = [0, 64], sizes = [2, 32], strides = [1, 1]} : vector<2x128xf32> to vector<2x32xf32>
    %49 = vector.extract_strided_slice %45 {offsets = [0, 96], sizes = [2, 32], strides = [1, 1]} : vector<2x128xf32> to vector<2x32xf32>
    %50 = arith.mulf %47, %38 : vector<2x32xf32>
    %51 = arith.mulf %46, %48 : vector<2x32xf32>
    %52 = arith.addf %50, %51 : vector<2x32xf32>
    %53 = math.tanh %52 : vector<2x32xf32>
    %54 = arith.mulf %49, %53 : vector<2x32xf32>
    %c0_25 = arith.constant 0 : index
    %c0_26 = arith.constant 0 : index
    %55 = vector.load %arg10[%c0_25, %c0_26] : memref<16x32xf32, #tpu.memory_space<vmem>>, vector<2x32xf32>
    tpu.vector_store %arg10[%c0_25, %c0_26], %54 {strides = array<i32>} : memref<16x32xf32, #tpu.memory_space<vmem>>, vector<2x32xf32>,
    %56 = vector.extract_strided_slice %24 {offsets = [2, 0], sizes = [2, 128], strides = [1, 1]} : vector<16x128xf32> to vector<2x128xf32>
    %cst_27 = arith.constant dense<0.000000e+00> : vector<2x128xf32>
    %57 = tpu.matmul %54, %3, %cst_27 {dimension_numbers = #tpu.dot_dimension_numbers<[1], [0], [0], [1], [0, 0, 1, 1], [], []>} : vector<2x32xf32>, vector<32x128xf32>, vector<2x128xf32> -> vector<2x128xf32>
    %58 = arith.addf %56, %57 : vector<2x128xf32>
    %59 = arith.mulf %58, %33 : vector<2x128xf32>
    %60 = math.tanh %59 : vector<2x128xf32>
    %61 = arith.mulf %60, %33 : vector<2x128xf32>
    %62 = arith.addf %61, %36 : vector<2x128xf32>
    %63 = vector.extract_strided_slice %62 {offsets = [0, 0], sizes = [2, 32], strides = [1, 1]} : vector<2x128xf32> to vector<2x32xf32>
    %64 = vector.extract_strided_slice %62 {offsets = [0, 32], sizes = [2, 32], strides = [1, 1]} : vector<2x128xf32> to vector<2x32xf32>
    %65 = vector.extract_strided_slice %62 {offsets = [0, 64], sizes = [2, 32], strides = [1, 1]} : vector<2x128xf32> to vector<2x32xf32>
    %66 = vector.extract_strided_slice %62 {offsets = [0, 96], sizes = [2, 32], strides = [1, 1]} : vector<2x128xf32> to vector<2x32xf32>
    %67 = arith.mulf %64, %52 : vector<2x32xf32>
    %68 = arith.mulf %63, %65 : vector<2x32xf32>
    %69 = arith.addf %67, %68 : vector<2x32xf32>
    %70 = math.tanh %69 : vector<2x32xf32>
    %71 = arith.mulf %66, %70 : vector<2x32xf32>
    %c2 = arith.constant 2 : index
    %c0_28 = arith.constant 0 : index
    %72 = vector.load %arg10[%c2, %c0_28] : memref<16x32xf32, #tpu.memory_space<vmem>>, vector<2x32xf32>
    tpu.vector_store %arg10[%c2, %c0_28], %71 {strides = array<i32>} : memref<16x32xf32, #tpu.memory_space<vmem>>, vector<2x32xf32>,
    %73 = vector.extract_strided_slice %24 {offsets = [4, 0], sizes = [2, 128], strides = [1, 1]} : vector<16x128xf32> to vector<2x128xf32>
    %cst_29 = arith.constant dense<0.000000e+00> : vector<2x128xf32>
    %74 = tpu.matmul %71, %3, %cst_29 {dimension_numbers = #tpu.dot_dimension_numbers<[1], [0], [0], [1], [0, 0, 1, 1], [], []>} : vector<2x32xf32>, vector<32x128xf32>, vector<2x128xf32> -> vector<2x128xf32>
    %75 = arith.addf %73, %74 : vector<2x128xf32>
    %76 = arith.mulf %75, %33 : vector<2x128xf32>
    %77 = math.tanh %76 : vector<2x128xf32>
    %78 = arith.mulf %77, %33 : vector<2x128xf32>
    %79 = arith.addf %78, %36 : vector<2x128xf32>
    %80 = vector.extract_strided_slice %79 {offsets = [0, 0], sizes = [2, 32], strides = [1, 1]} : vector<2x128xf32> to vector<2x32xf32>
    %81 = vector.extract_strided_slice %79 {offsets = [0, 32], sizes = [2, 32], strides = [1, 1]} : vector<2x128xf32> to vector<2x32xf32>
    %82 = vector.extract_strided_slice %79 {offsets = [0, 64], sizes = [2, 32], strides = [1, 1]} : vector<2x128xf32> to vector<2x32xf32>
    %83 = vector.extract_strided_slice %79 {offsets = [0, 96], sizes = [2, 32], strides = [1, 1]} : vector<2x128xf32> to vector<2x32xf32>
    %84 = arith.mulf %81, %69 : vector<2x32xf32>
    %85 = arith.mulf %80, %82 : vector<2x32xf32>
    %86 = arith.addf %84, %85 : vector<2x32xf32>
    %87 = math.tanh %86 : vector<2x32xf32>
    %88 = arith.mulf %83, %87 : vector<2x32xf32>
    %c4 = arith.constant 4 : index
    %c0_30 = arith.constant 0 : index
    %89 = vector.load %arg10[%c4, %c0_30] : memref<16x32xf32, #tpu.memory_space<vmem>>, vector<2x32xf32>
    tpu.vector_store %arg10[%c4, %c0_30], %88 {strides = array<i32>} : memref<16x32xf32, #tpu.memory_space<vmem>>, vector<2x32xf32>,
    %90 = vector.extract_strided_slice %24 {offsets = [6, 0], sizes = [2, 128], strides = [1, 1]} : vector<16x128xf32> to vector<2x128xf32>
    %cst_31 = arith.constant dense<0.000000e+00> : vector<2x128xf32>
    %91 = tpu.matmul %88, %3, %cst_31 {dimension_numbers = #tpu.dot_dimension_numbers<[1], [0], [0], [1], [0, 0, 1, 1], [], []>} : vector<2x32xf32>, vector<32x128xf32>, vector<2x128xf32> -> vector<2x128xf32>
    %92 = arith.addf %90, %91 : vector<2x128xf32>
    %93 = arith.mulf %92, %33 : vector<2x128xf32>
    %94 = math.tanh %93 : vector<2x128xf32>
    %95 = arith.mulf %94, %33 : vector<2x128xf32>
    %96 = arith.addf %95, %36 : vector<2x128xf32>
    %97 = vector.extract_strided_slice %96 {offsets = [0, 0], sizes = [2, 32], strides = [1, 1]} : vector<2x128xf32> to vector<2x32xf32>
    %98 = vector.extract_strided_slice %96 {offsets = [0, 32], sizes = [2, 32], strides = [1, 1]} : vector<2x128xf32> to vector<2x32xf32>
    %99 = vector.extract_strided_slice %96 {offsets = [0, 64], sizes = [2, 32], strides = [1, 1]} : vector<2x128xf32> to vector<2x32xf32>
    %100 = vector.extract_strided_slice %96 {offsets = [0, 96], sizes = [2, 32], strides = [1, 1]} : vector<2x128xf32> to vector<2x32xf32>
    %101 = arith.mulf %98, %86 : vector<2x32xf32>
    %102 = arith.mulf %97, %99 : vector<2x32xf32>
    %103 = arith.addf %101, %102 : vector<2x32xf32>
    %104 = math.tanh %103 : vector<2x32xf32>
    %105 = arith.mulf %100, %104 : vector<2x32xf32>
    %c6 = arith.constant 6 : index
    %c0_32 = arith.constant 0 : index
    %106 = vector.load %arg10[%c6, %c0_32] : memref<16x32xf32, #tpu.memory_space<vmem>>, vector<2x32xf32>
    tpu.vector_store %arg10[%c6, %c0_32], %105 {strides = array<i32>} : memref<16x32xf32, #tpu.memory_space<vmem>>, vector<2x32xf32>,
    %107 = vector.extract_strided_slice %24 {offsets = [8, 0], sizes = [2, 128], strides = [1, 1]} : vector<16x128xf32> to vector<2x128xf32>
    %cst_33 = arith.constant dense<0.000000e+00> : vector<2x128xf32>
    %108 = tpu.matmul %105, %3, %cst_33 {dimension_numbers = #tpu.dot_dimension_numbers<[1], [0], [0], [1], [0, 0, 1, 1], [], []>} : vector<2x32xf32>, vector<32x128xf32>, vector<2x128xf32> -> vector<2x128xf32>
    %109 = arith.addf %107, %108 : vector<2x128xf32>
    %110 = arith.mulf %109, %33 : vector<2x128xf32>
    %111 = math.tanh %110 : vector<2x128xf32>
    %112 = arith.mulf %111, %33 : vector<2x128xf32>
    %113 = arith.addf %112, %36 : vector<2x128xf32>
    %114 = vector.extract_strided_slice %113 {offsets = [0, 0], sizes = [2, 32], strides = [1, 1]} : vector<2x128xf32> to vector<2x32xf32>
    %115 = vector.extract_strided_slice %113 {offsets = [0, 32], sizes = [2, 32], strides = [1, 1]} : vector<2x128xf32> to vector<2x32xf32>
    %116 = vector.extract_strided_slice %113 {offsets = [0, 64], sizes = [2, 32], strides = [1, 1]} : vector<2x128xf32> to vector<2x32xf32>
    %117 = vector.extract_strided_slice %113 {offsets = [0, 96], sizes = [2, 32], strides = [1, 1]} : vector<2x128xf32> to vector<2x32xf32>
    %118 = arith.mulf %115, %103 : vector<2x32xf32>
    %119 = arith.mulf %114, %116 : vector<2x32xf32>
    %120 = arith.addf %118, %119 : vector<2x32xf32>
    %121 = math.tanh %120 : vector<2x32xf32>
    %122 = arith.mulf %117, %121 : vector<2x32xf32>
    %c8 = arith.constant 8 : index
    %c0_34 = arith.constant 0 : index
    %123 = vector.load %arg10[%c8, %c0_34] : memref<16x32xf32, #tpu.memory_space<vmem>>, vector<2x32xf32>
    tpu.vector_store %arg10[%c8, %c0_34], %122 {strides = array<i32>} : memref<16x32xf32, #tpu.memory_space<vmem>>, vector<2x32xf32>,
    %124 = vector.extract_strided_slice %24 {offsets = [10, 0], sizes = [2, 128], strides = [1, 1]} : vector<16x128xf32> to vector<2x128xf32>
    %cst_35 = arith.constant dense<0.000000e+00> : vector<2x128xf32>
    %125 = tpu.matmul %122, %3, %cst_35 {dimension_numbers = #tpu.dot_dimension_numbers<[1], [0], [0], [1], [0, 0, 1, 1], [], []>} : vector<2x32xf32>, vector<32x128xf32>, vector<2x128xf32> -> vector<2x128xf32>
    %126 = arith.addf %124, %125 : vector<2x128xf32>
    %127 = arith.mulf %126, %33 : vector<2x128xf32>
    %128 = math.tanh %127 : vector<2x128xf32>
    %129 = arith.mulf %128, %33 : vector<2x128xf32>
    %130 = arith.addf %129, %36 : vector<2x128xf32>
    %131 = vector.extract_strided_slice %130 {offsets = [0, 0], sizes = [2, 32], strides = [1, 1]} : vector<2x128xf32> to vector<2x32xf32>
    %132 = vector.extract_strided_slice %130 {offsets = [0, 32], sizes = [2, 32], strides = [1, 1]} : vector<2x128xf32> to vector<2x32xf32>
    %133 = vector.extract_strided_slice %130 {offsets = [0, 64], sizes = [2, 32], strides = [1, 1]} : vector<2x128xf32> to vector<2x32xf32>
    %134 = vector.extract_strided_slice %130 {offsets = [0, 96], sizes = [2, 32], strides = [1, 1]} : vector<2x128xf32> to vector<2x32xf32>
    %135 = arith.mulf %132, %120 : vector<2x32xf32>
    %136 = arith.mulf %131, %133 : vector<2x32xf32>
    %137 = arith.addf %135, %136 : vector<2x32xf32>
    %138 = math.tanh %137 : vector<2x32xf32>
    %139 = arith.mulf %134, %138 : vector<2x32xf32>
    %c10 = arith.constant 10 : index
    %c0_36 = arith.constant 0 : index
    %140 = vector.load %arg10[%c10, %c0_36] : memref<16x32xf32, #tpu.memory_space<vmem>>, vector<2x32xf32>
    tpu.vector_store %arg10[%c10, %c0_36], %139 {strides = array<i32>} : memref<16x32xf32, #tpu.memory_space<vmem>>, vector<2x32xf32>,
    %141 = vector.extract_strided_slice %24 {offsets = [12, 0], sizes = [2, 128], strides = [1, 1]} : vector<16x128xf32> to vector<2x128xf32>
    %cst_37 = arith.constant dense<0.000000e+00> : vector<2x128xf32>
    %142 = tpu.matmul %139, %3, %cst_37 {dimension_numbers = #tpu.dot_dimension_numbers<[1], [0], [0], [1], [0, 0, 1, 1], [], []>} : vector<2x32xf32>, vector<32x128xf32>, vector<2x128xf32> -> vector<2x128xf32>
    %143 = arith.addf %141, %142 : vector<2x128xf32>
    %144 = arith.mulf %143, %33 : vector<2x128xf32>
    %145 = math.tanh %144 : vector<2x128xf32>
    %146 = arith.mulf %145, %33 : vector<2x128xf32>
    %147 = arith.addf %146, %36 : vector<2x128xf32>
    %148 = vector.extract_strided_slice %147 {offsets = [0, 0], sizes = [2, 32], strides = [1, 1]} : vector<2x128xf32> to vector<2x32xf32>
    %149 = vector.extract_strided_slice %147 {offsets = [0, 32], sizes = [2, 32], strides = [1, 1]} : vector<2x128xf32> to vector<2x32xf32>
    %150 = vector.extract_strided_slice %147 {offsets = [0, 64], sizes = [2, 32], strides = [1, 1]} : vector<2x128xf32> to vector<2x32xf32>
    %151 = vector.extract_strided_slice %147 {offsets = [0, 96], sizes = [2, 32], strides = [1, 1]} : vector<2x128xf32> to vector<2x32xf32>
    %152 = arith.mulf %149, %137 : vector<2x32xf32>
    %153 = arith.mulf %148, %150 : vector<2x32xf32>
    %154 = arith.addf %152, %153 : vector<2x32xf32>
    %155 = math.tanh %154 : vector<2x32xf32>
    %156 = arith.mulf %151, %155 : vector<2x32xf32>
    %c12 = arith.constant 12 : index
    %c0_38 = arith.constant 0 : index
    %157 = vector.load %arg10[%c12, %c0_38] : memref<16x32xf32, #tpu.memory_space<vmem>>, vector<2x32xf32>
    tpu.vector_store %arg10[%c12, %c0_38], %156 {strides = array<i32>} : memref<16x32xf32, #tpu.memory_space<vmem>>, vector<2x32xf32>,
    %158 = vector.extract_strided_slice %24 {offsets = [14, 0], sizes = [2, 128], strides = [1, 1]} : vector<16x128xf32> to vector<2x128xf32>
    %cst_39 = arith.constant dense<0.000000e+00> : vector<2x128xf32>
    %159 = tpu.matmul %156, %3, %cst_39 {dimension_numbers = #tpu.dot_dimension_numbers<[1], [0], [0], [1], [0, 0, 1, 1], [], []>} : vector<2x32xf32>, vector<32x128xf32>, vector<2x128xf32> -> vector<2x128xf32>
    %160 = arith.addf %158, %159 : vector<2x128xf32>
    %161 = arith.mulf %160, %33 : vector<2x128xf32>
    %162 = math.tanh %161 : vector<2x128xf32>
    %163 = arith.mulf %162, %33 : vector<2x128xf32>
    %164 = arith.addf %163, %36 : vector<2x128xf32>
    %165 = vector.extract_strided_slice %164 {offsets = [0, 0], sizes = [2, 32], strides = [1, 1]} : vector<2x128xf32> to vector<2x32xf32>
    %166 = vector.extract_strided_slice %164 {offsets = [0, 32], sizes = [2, 32], strides = [1, 1]} : vector<2x128xf32> to vector<2x32xf32>
    %167 = vector.extract_strided_slice %164 {offsets = [0, 64], sizes = [2, 32], strides = [1, 1]} : vector<2x128xf32> to vector<2x32xf32>
    %168 = vector.extract_strided_slice %164 {offsets = [0, 96], sizes = [2, 32], strides = [1, 1]} : vector<2x128xf32> to vector<2x32xf32>
    %169 = arith.mulf %166, %154 : vector<2x32xf32>
    %170 = arith.mulf %165, %167 : vector<2x32xf32>
    %171 = arith.addf %169, %170 : vector<2x32xf32>
    %172 = math.tanh %171 : vector<2x32xf32>
    %173 = arith.mulf %168, %172 : vector<2x32xf32>
    %c14 = arith.constant 14 : index
    %c0_40 = arith.constant 0 : index
    %174 = vector.load %arg10[%c14, %c0_40] : memref<16x32xf32, #tpu.memory_space<vmem>>, vector<2x32xf32>
    tpu.vector_store %arg10[%c14, %c0_40], %173 {strides = array<i32>} : memref<16x32xf32, #tpu.memory_space<vmem>>, vector<2x32xf32>,
    %c0_41 = arith.constant 0 : index
    %c0_42 = arith.constant 0 : index
    %175 = vector.load %arg10[%c0_41, %c0_42] : memref<16x32xf32, #tpu.memory_space<vmem>>, vector<16x32xf32>
    %cst_43 = arith.constant dense<0.000000e+00> : vector<16x4xf32>
    %176 = tpu.matmul %175, %5, %cst_43 {dimension_numbers = #tpu.dot_dimension_numbers<[1], [0], [0], [1], [0, 0, 1, 1], [], []>} : vector<16x32xf32>, vector<32x4xf32>, vector<16x4xf32> -> vector<16x4xf32>
    %177 = vector.broadcast %6 : vector<1x4xf32> to vector<16x4xf32>
    %178 = arith.addf %176, %177 : vector<16x4xf32>
    %c0_44 = arith.constant 0 : index
    %c0_45 = arith.constant 0 : index
    %c0_46 = arith.constant 0 : index
    %179 = vector.load %arg9[%c0_44, %c0_45, %c0_46] : memref<2x16x4xf32, #tpu.memory_space<vmem>>, vector<1x16x4xf32>
    %180 = vector.shape_cast %179 : vector<1x16x4xf32> to vector<16x4xf32>
    %181 = vector.shape_cast %178 : vector<16x4xf32> to vector<1x16x4xf32>
    tpu.vector_store %arg9[%c0_44, %c0_45, %c0_46], %181 {strides = array<i32>} : memref<2x16x4xf32, #tpu.memory_space<vmem>>, vector<1x16x4xf32>,
    %cst_47 = arith.constant 5.000000e-01 : f32
    %182 = vector.broadcast %cst_47 : f32 to vector<16x4xf32>
    %183 = arith.mulf %182, %178 : vector<16x4xf32>
    %184 = math.tanh %183 : vector<16x4xf32>
    %cst_48 = arith.constant 5.000000e-01 : f32
    %185 = vector.broadcast %cst_48 : f32 to vector<16x4xf32>
    %186 = arith.mulf %185, %184 : vector<16x4xf32>
    %cst_49 = arith.constant 5.000000e-01 : f32
    %187 = vector.broadcast %cst_49 : f32 to vector<16x4xf32>
    %188 = arith.addf %187, %186 : vector<16x4xf32>
    %c1 = arith.constant 1 : index
    %c0_50 = arith.constant 0 : index
    %c0_51 = arith.constant 0 : index
    %189 = vector.load %arg9[%c1, %c0_50, %c0_51] : memref<2x16x4xf32, #tpu.memory_space<vmem>>, vector<1x16x4xf32>
    %190 = vector.shape_cast %189 : vector<1x16x4xf32> to vector<16x4xf32>
    %191 = vector.shape_cast %188 : vector<16x4xf32> to vector<1x16x4xf32>
    tpu.vector_store %arg9[%c1, %c0_50, %c0_51], %191 {strides = array<i32>} : memref<2x16x4xf32, #tpu.memory_space<vmem>>, vector<1x16x4xf32>,
    return
  }
}

</mosaic_0001>

<llo_original>
// kernel: lstm_forward.1
$region0: #{lstm_forward.1}
  #allocation0 [shape = 'u32[]', space=smem, size = 0x4, offset = 0x4, fixed_abs, tag = 'smem constant byte address 0x4 - core index']
  #allocation1 [shape = 'u32[144,128]{1,0:T(1,128)}', space=vmem, size = 0x12000, scoped, tag = 'internal scratch']
  #allocation2 [shape = 'f32[16,32]{1,0:T(8,128)}', space=vmem, size = 0x2000, scoped, tag = 'scratch operand']
  %s0 = inlined_call_operand.vmem [shape: f32[16,16], index: 0, kind: input, shape index: {}]
  %s1 = inlined_call_operand.vmem [shape: f32[16,1], index: 1, kind: input, shape index: {}]
  %s2 = inlined_call_operand.vmem [shape: f32[1,16], index: 2, kind: input, shape index: {}]
  %s3 = inlined_call_operand.vmem [shape: f32[1,16], index: 3, kind: input, shape index: {}]
  %s4 = inlined_call_operand.vmem [shape: f32[16,128], index: 4, kind: input, shape index: {}]
  %s5 = inlined_call_operand.vmem [shape: f32[32,128], index: 5, kind: input, shape index: {}]
  %s6 = inlined_call_operand.vmem [shape: f32[1,128], index: 6, kind: input, shape index: {}]
  %s7 = inlined_call_operand.vmem [shape: f32[32,4], index: 7, kind: input, shape index: {}]
  %s8 = inlined_call_operand.vmem [shape: f32[1,4], index: 8, kind: input, shape index: {}]
  %s9 = inlined_call_operand.vmem [shape: f32[2,16,4], index: 9, kind: output, shape index: {}]
  %s10 = sld [smem:[#allocation0]]
  $region46: #{lstm_forward.1} parent=0
    _
  %s12 = ssub.s32 1, %s10
  %s13 = scalar_select 0, %s12, %s10
  // Predicated region
  $region2: #{lstm_forward.1} parent=0 // pred_check
    _
  $region3: #{lstm_forward.1} parent=0 // pred_check_branch
    %15 = sbr.rel (0) target = $region5
  $region4: #{lstm_forward.1} parent=0 // pred_region
    _
  $region5: #{lstm_forward.1} parent=0 // pred_fallthru
    _
  // Predicated region
  $region6: #{lstm_forward.1} parent=0 // pred_check
    _
  $region7: #{lstm_forward.1} parent=0 // pred_check_branch
    %17 = sbr.rel (0) target = $region9
  $region8: #{lstm_forward.1} parent=0 // pred_region
    _
  $region9: #{lstm_forward.1} parent=0 // pred_fallthru
    _
  // Predicated region
  $region10: #{lstm_forward.1} parent=0 // pred_check
    _
  $region11: #{lstm_forward.1} parent=0 // pred_check_branch
    %19 = sbr.rel (0) target = $region13
  $region12: #{lstm_forward.1} parent=0 // pred_region
    _
  $region13: #{lstm_forward.1} parent=0 // pred_fallthru
    _
  // Predicated region
  $region14: #{lstm_forward.1} parent=0 // pred_check
    _
  $region15: #{lstm_forward.1} parent=0 // pred_check_branch
    %21 = sbr.rel (0) target = $region17
  $region16: #{lstm_forward.1} parent=0 // pred_region
    _
  $region17: #{lstm_forward.1} parent=0 // pred_fallthru
    _
  // Predicated region
  $region18: #{lstm_forward.1} parent=0 // pred_check
    _
  $region19: #{lstm_forward.1} parent=0 // pred_check_branch
    %23 = sbr.rel (0) target = $region21
  $region20: #{lstm_forward.1} parent=0 // pred_region
    _
  $region21: #{lstm_forward.1} parent=0 // pred_fallthru
    _
  // Predicated region
  $region22: #{lstm_forward.1} parent=0 // pred_check
    _
  $region23: #{lstm_forward.1} parent=0 // pred_check_branch
    %25 = sbr.rel (0) target = $region25
  $region24: #{lstm_forward.1} parent=0 // pred_region
    _
  $region25: #{lstm_forward.1} parent=0 // pred_fallthru
    _
  // Predicated region
  $region26: #{lstm_forward.1} parent=0 // pred_check
    _
  $region27: #{lstm_forward.1} parent=0 // pred_check_branch
    %27 = sbr.rel (0) target = $region29
  $region28: #{lstm_forward.1} parent=0 // pred_region
    _
  $region29: #{lstm_forward.1} parent=0 // pred_fallthru
    _
  // Predicated region
  $region30: #{lstm_forward.1} parent=0 // pred_check
    _
  $region31: #{lstm_forward.1} parent=0 // pred_check_branch
    %29 = sbr.rel (0) target = $region33
  $region32: #{lstm_forward.1} parent=0 // pred_region
    _
  $region33: #{lstm_forward.1} parent=0 // pred_fallthru
    _
  // Predicated region
  $region34: #{lstm_forward.1} parent=0 // pred_check
    _
  $region35: #{lstm_forward.1} parent=0 // pred_check_branch
    %31 = sbr.rel (0) target = $region37
  $region36: #{lstm_forward.1} parent=0 // pred_region
    _
  $region37: #{lstm_forward.1} parent=0 // pred_fallthru
    _
  %v32 = vld [vmem:[%s2] sm:$0x1]
  %v33 = vld [vmem:[%s3] sm:$0x1]
  %v34 = vld [vmem:[%s4] sm:$0xff]
  %v35 = vld [vmem:[%s4 + $0x8] sm:$0xff]
  %v36 = vld [vmem:[%s5] sm:$0xff]
  %v37 = vld [vmem:[%s5 + $0x8] sm:$0xff]
  %v38 = vld [vmem:[%s5 + $0x10] sm:$0xff]
  %v39 = vld [vmem:[%s5 + $0x18] sm:$0xff]
  %v40 = vld [vmem:[%s6] sm:$0x1]
  %v41 = vld [vmem:[%s7] sm:$0xff]
  %v42 = vld [vmem:[%s7 + $0x8] sm:$0xff]
  %v43 = vld [vmem:[%s7 + $0x10] sm:$0xff]
  %v44 = vld [vmem:[%s7 + $0x18] sm:$0xff]
  %v45 = vld [vmem:[%s8] sm:$0x1]
  %v46 = vld [vmem:[%s0] sm:$0xff]
  %v47 = vld [vmem:[%s0 + $0x8] sm:$0xff]
  %v48 = vld [vmem:[%s1] sm:$0xff]
  %v49 = vld [vmem:[%s1 + $0x8] sm:$0xff]
  %51 = vset.pattern.permute.xlu0 0
  %52 = vperm.xlu0 %51, %v48
  %v53 = vpop.permute.xlu0 %52
  %56 = vset.pattern.permute.xlu0 0
  %57 = vperm.xlu0 %56, %v49
  %v58 = vpop.permute.xlu0 %57
  %v61 = vlaneseq
  %v62 = vshrl.u32 %v61, 7
  %v63 = vsub.s32 0, %v62
  %v64 = vrot.slane %v32, %v63
  %v66 = vmul.f32 %v53, %v64
  %v67 = vmul.f32 %v58, %v64
  %v69 = vlaneseq
  %v70 = vshrl.u32 %v69, 7
  %v71 = vsub.s32 0, %v70
  %v72 = vrot.slane %v33, %v71
  %v74 = vadd.f32 %v66, %v72
  %v75 = vadd.f32 %v67, %v72
  %v76 = vlaneseq
  %v77 = vand.u32 %v76, 127
  %vm78 = vcmp.lt.s32.totalorder %v77, 15
  %v79 = vand.u32 2147483647, %v74
  %vm80 = vcmp.le.f32.partialorder %v79, 0.7853982
  %vm81 = vcmp.lt.s32.totalorder %v74, 0
  %v82 = vand.u32 %v74, 2139095040
  %v83 = vshrl.u32 %v82, 23
  %v84 = vsub.s32 %v83, 127
  %v85 = vand.u32 2147483647, %v74
  %v86 = vand.u32 %v85, 8388607
  %v87 = vor.u32 %v86, 8388608
  %v88 = vsub.s32 0, %v87
  %v89 = vadd.s32 %v84, 1
  %vm90 = vcmp.gt.s32.totalorder %v89, 0
  %v91 = vsel %vm90, %v89, 0
  %v92 = vshrl.u32 %v91, 5
  %v93 = vand.u32 %v91, 31
  %v94 = vsub.s32 32, %v93
  %v95 = vshrl.u32 683565275, %v94
  %v96 = vshll.u32 683565275, %v93
  %v97 = vshrl.u32 2475754826, %v94
  %v98 = vor.u32 %v96, %v97
  %v99 = vshll.u32 2475754826, %v93
  %v100 = vshrl.u32 2131351028, %v94
  %v101 = vor.u32 %v99, %v100
  %v102 = vshll.u32 2131351028, %v93
  %v103 = vshrl.u32 2102212464, %v94
  %v104 = vor.u32 %v102, %v103
  %v105 = vshll.u32 2102212464, %v93
  %v106 = vshrl.u32 920167782, %v94
  %v107 = vor.u32 %v105, %v106
  %v108 = vshll.u32 920167782, %v93
  %v109 = vshrl.u32 1326507024, %v94
  %v110 = vor.u32 %v108, %v109
  %vm111 = vcmp.lt.s32.totalorder %v92, 1
  %vm112 = vcmp.lt.s32.totalorder %v92, 2
  %vm113 = vcmp.lt.s32.totalorder %v92, 3
  %vm114 = vcmp.lt.s32.totalorder %v92, 4
  %v115 = vsel %vm111, %v95, %v98
  %v116 = vsel %vm114, %v104, 2102212464
  %v117 = vsel %vm113, %v101, %v116
  %v118 = vsel %vm112, %v115, %v117
  %v119 = vsel %vm111, %v98, %v101
  %v120 = vsel %vm114, %v107, 920167782
  %v121 = vsel %vm113, %v104, %v120
  %v122 = vsel %vm112, %v119, %v121
  %v123 = vsel %vm111, %v101, %v104
  %v124 = vsel %vm114, %v110, 1326507024
  %v125 = vsel %vm113, %v107, %v124
  %v126 = vsel %vm112, %v123, %v125
  %v127 = vshll.u32 %v87, 8
  %v128 = vmul.u32.u64.compose %v127, %v126
  %v129 = vextract.low.u32 %v128
  %v130 = vextract.high.u32 %v128
  %v131 = vmul.u32.u64.compose %v127, %v122
  %v132 = vextract.low.u32 %v131
  %v133 = vextract.high.u32 %v131
  %v134 = vmul.u32 %v127, %v118
  %v135 = vadd.s32 %v130, %v132
  %vm136 = vc.u32 %v130, %v132
  %v137 = vadd.s32 %v133, 1
  %v138 = vsel %vm136, %v137, %v133
  %v139 = vadd.s32 %v134, %v138
  %v140 = vadd.s32 %v139, 536870912
  %v141 = vshrl.u32 %v140, 30
  %v142 = vshll.u32 %v141, 30
  %v143 = vsub.s32 %v139, %v142
  %vm144 = vcmp.lt.s32.totalorder %v143, 0
  %v145 = vsub.s32 0, %v143
  %v146 = vsel %vm144, %v145, %v143
  %v147 = vclz %v146
  %v148 = vsub.s32 %v147, 2
  %vm149 = vcmp.gt.s32.totalorder 0, %v148
  %v150 = vsel %vm149, 0, %v148
  %v151 = vsub.s32 32, %v150
  %v152 = vshll.u32 %v143, %v150
  %v153 = vshrl.u32 %v135, %v151
  %v154 = vor.u32 %v152, %v153
  %v155 = vsub.s32 4294967266, %v150
  %v156 = vadd.s32 %v155, 127
  %v157 = vshll.u32 %v156, 23
  %v158 = vor.u32 4788187, %v157
  %v159 = vand.u32 2147483647, %v158
  %v161 = vcvt.s32.f32 %v154
  %v162 = vmul.f32 %v161, %v159
  %v163 = vxor.u32 %v162, 2147483648
  %v164 = vsel %vm81, %v163, %v162
  %v165 = vsub.s32 4, %v141
  %v166 = vsel %vm81, %v165, %v141
  %v167 = vsel %vm80, %v74, %v164
  %v168 = vsel %vm80, 0, %v166
  %v169 = vcosq.f32.pop %v167
  %v170 = vsinq.f32.pop %v167
  %vm171 = vweird.f32 %v74
  %v172 = vadd.s32 %v168, 3
  %v173 = vand.u32 %v172, 3
  %vm174 = vcmp.lt.s32.totalorder %v173, 2
  %vm175 = vcmp.eq.s32.totalorder %v173, 0
  %v176 = vxor.u32 %v170, 2147483648
  %v177 = vsel %vm175, %v169, %v176
  %vm178 = vcmp.eq.s32.totalorder %v173, 2
  %v179 = vxor.u32 %v169, 2147483648
  %v180 = vsel %vm178, %v179, %v170
  %v181 = vsel %vm174, %v177, %v180
  %v182 = vsel %vm171, nan, %v181
  %v183 = vand.u32 2147483647, %v75
  %vm184 = vcmp.le.f32.partialorder %v183, 0.7853982
  %vm185 = vcmp.lt.s32.totalorder %v75, 0
  %v186 = vand.u32 %v75, 2139095040
  %v187 = vshrl.u32 %v186, 23
  %v188 = vsub.s32 %v187, 127
  %v189 = vand.u32 2147483647, %v75
  %v190 = vand.u32 %v189, 8388607
  %v191 = vor.u32 %v190, 8388608
  %v192 = vsub.s32 0, %v191
  %v193 = vadd.s32 %v188, 1
  %vm194 = vcmp.gt.s32.totalorder %v193, 0
  %v195 = vsel %vm194, %v193, 0
  %v196 = vshrl.u32 %v195, 5
  %v197 = vand.u32 %v195, 31
  %v198 = vsub.s32 32, %v197
  %v199 = vshrl.u32 683565275, %v198
  %v200 = vshll.u32 683565275, %v197
  %v201 = vshrl.u32 2475754826, %v198
  %v202 = vor.u32 %v200, %v201
  %v203 = vshll.u32 2475754826, %v197
  %v204 = vshrl.u32 2131351028, %v198
  %v205 = vor.u32 %v203, %v204
  %v206 = vshll.u32 2131351028, %v197
  %v207 = vshrl.u32 2102212464, %v198
  %v208 = vor.u32 %v206, %v207
  %v209 = vshll.u32 2102212464, %v197
  %v210 = vshrl.u32 920167782, %v198
  %v211 = vor.u32 %v209, %v210
  %v212 = vshll.u32 920167782, %v197
  %v213 = vshrl.u32 1326507024, %v198
  %v214 = vor.u32 %v212, %v213
  %vm215 = vcmp.lt.s32.totalorder %v196, 1
  %vm216 = vcmp.lt.s32.totalorder %v196, 2
  %vm217 = vcmp.lt.s32.totalorder %v196, 3
  %vm218 = vcmp.lt.s32.totalorder %v196, 4
  %v219 = vsel %vm215, %v199, %v202
  %v220 = vsel %vm218, %v208, 2102212464
  %v221 = vsel %vm217, %v205, %v220
  %v222 = vsel %vm216, %v219, %v221
  %v223 = vsel %vm215, %v202, %v205
  %v224 = vsel %vm218, %v211, 920167782
  %v225 = vsel %vm217, %v208, %v224
  %v226 = vsel %vm216, %v223, %v225
  %v227 = vsel %vm215, %v205, %v208
  %v228 = vsel %vm218, %v214, 1326507024
  %v229 = vsel %vm217, %v211, %v228
  %v230 = vsel %vm216, %v227, %v229
  %v231 = vshll.u32 %v191, 8
  %v232 = vmul.u32.u64.compose %v231, %v230
  %v233 = vextract.low.u32 %v232
  %v234 = vextract.high.u32 %v232
  %v235 = vmul.u32.u64.compose %v231, %v226
  %v236 = vextract.low.u32 %v235
  %v237 = vextract.high.u32 %v235
  %v238 = vmul.u32 %v231, %v222
  %v239 = vadd.s32 %v234, %v236
  %vm240 = vc.u32 %v234, %v236
  %v241 = vadd.s32 %v237, 1
  %v242 = vsel %vm240, %v241, %v237
  %v243 = vadd.s32 %v238, %v242
  %v244 = vadd.s32 %v243, 536870912
  %v245 = vshrl.u32 %v244, 30
  %v246 = vshll.u32 %v245, 30
  %v247 = vsub.s32 %v243, %v246
  %vm248 = vcmp.lt.s32.totalorder %v247, 0
  %v249 = vsub.s32 0, %v247
  %v250 = vsel %vm248, %v249, %v247
  %v251 = vclz %v250
  %v252 = vsub.s32 %v251, 2
  %vm253 = vcmp.gt.s32.totalorder 0, %v252
  %v254 = vsel %vm253, 0, %v252
  %v255 = vsub.s32 32, %v254
  %v256 = vshll.u32 %v247, %v254
  %v257 = vshrl.u32 %v239, %v255
  %v258 = vor.u32 %v256, %v257
  %v259 = vsub.s32 4294967266, %v254
  %v260 = vadd.s32 %v259, 127
  %v261 = vshll.u32 %v260, 23
  %v262 = vor.u32 4788187, %v261
  %v263 = vand.u32 2147483647, %v262
  %v265 = vcvt.s32.f32 %v258
  %v266 = vmul.f32 %v265, %v263
  %v267 = vxor.u32 %v266, 2147483648
  %v268 = vsel %vm185, %v267, %v266
  %v269 = vsub.s32 4, %v245
  %v270 = vsel %vm185, %v269, %v245
  %v271 = vsel %vm184, %v75, %v268
  %v272 = vsel %vm184, 0, %v270
  %v273 = vcosq.f32.pop %v271
  %v274 = vsinq.f32.pop %v271
  %vm275 = vweird.f32 %v75
  %v276 = vadd.s32 %v272, 3
  %v277 = vand.u32 %v276, 3
  %vm278 = vcmp.lt.s32.totalorder %v277, 2
  %vm279 = vcmp.eq.s32.totalorder %v277, 0
  %v280 = vxor.u32 %v274, 2147483648
  %v281 = vsel %vm279, %v273, %v280
  %vm282 = vcmp.eq.s32.totalorder %v277, 2
  %v283 = vxor.u32 %v273, 2147483648
  %v284 = vsel %vm282, %v283, %v274
  %v285 = vsel %vm278, %v281, %v284
  %v286 = vsel %vm275, nan, %v285
  %v287 = vsel %vm78, %v182, %v74
  %v288 = vsel %vm78, %v286, %v75
  %v289 = vmul.f32 %v287, 0.002
  %v290 = vmul.f32 %v288, 0.002
  %v291 = vadd.f32 %v46, %v289
  %v292 = vadd.f32 %v47, %v290
  %v294 = vlaneseq
  %v295 = vshrl.u32 %v294, 7
  %v296 = vsub.s32 0, %v295
  %v297 = vrot.slane %v40, %v296
  %vm299 = vcmask 130048
  %v301 = vsel %vm299, %v291, 0
  %v304 = vsel %vm299, %v292, 0
  %306 = vmatprep.subr.mxu0 0.0
  %307 = vmatpush1.msra.mxu0 %v34
  %308 = vmatprep.subr.mxu0 0.0
  %309 = vmatpush1.msra.mxu0 %v35
  %310 = vmatprep.subr.mxu0 0.0
  %311 = vmatpush1.msra.mxu0 0.0
  %312 = vmatprep.subr.mxu0 0.0
  %313 = vmatpush1.msra.mxu0 0.0
  %314 = vmatprep.subr.mxu0 0.0
  %315 = vmatpush1.msra.mxu0 0.0
  %316 = vmatprep.subr.mxu0 0.0
  %317 = vmatpush1.msra.mxu0 0.0
  %318 = vmatprep.subr.mxu0 0.0
  %319 = vmatpush1.msra.mxu0 0.0
  %320 = vmatprep.subr.mxu0 0.0
  %321 = vmatpush1.msra.mxu0 0.0
  %322 = vmatprep.subr.mxu0 0.0
  %323 = vmatpush1.msra.mxu0 0.0
  %324 = vmatprep.subr.mxu0 0.0
  %325 = vmatpush1.msra.mxu0 0.0
  %326 = vmatprep.subr.mxu0 0.0
  %327 = vmatpush1.msra.mxu0 0.0
  %328 = vmatprep.subr.mxu0 0.0
  %329 = vmatpush1.msra.mxu0 0.0
  %330 = vmatprep.subr.mxu0 0.0
  %331 = vmatpush1.msra.mxu0 0.0
  %332 = vmatprep.subr.mxu0 0.0
  %333 = vmatpush1.msra.mxu0 0.0
  %334 = vmatprep.subr.mxu0 0.0
  %335 = vmatpush1.msra.mxu0 0.0
  %336 = vmatprep.subr.mxu0 0.0
  %337 = vmatpush1.msra.mxu0 0.0
  %338 = vmatprep.subr.mxu0 0.0
  %339 = vmatpush1.msra.mxu0 0.0
  %340 = vmatprep.subr.mxu0 0.0
  %341 = vmatpush1.msra.mxu0 0.0
  %342 = vmatprep.subr.mxu0 0.0
  %343 = vmatpush1.msra.mxu0 0.0
  %344 = vmatprep.subr.mxu0 0.0
  %345 = vmatpush1.msra.mxu0 0.0
  %346 = vmatprep.subr.mxu0 0.0
  %347 = vmatpush1.msra.mxu0 0.0
  %348 = vmatprep.subr.mxu0 0.0
  %349 = vmatpush1.msra.mxu0 0.0
  %350 = vmatprep.subr.mxu0 0.0
  %351 = vmatpush1.msra.mxu0 0.0
  %352 = vmatprep.subr.mxu0 0.0
  %353 = vmatpush1.msra.mxu0 0.0
  %354 = vmatprep.subr.mxu0 0.0
  %355 = vmatpush1.msra.mxu0 0.0
  %356 = vmatprep.subr.mxu0 0.0
  %357 = vmatpush1.msra.mxu0 0.0
  %358 = vmatprep.subr.mxu0 0.0
  %359 = vmatpush1.msra.mxu0 0.0
  %360 = vmatprep.subr.mxu0 0.0
  %361 = vmatpush1.msra.mxu0 0.0
  %362 = vmatprep.subr.mxu0 0.0
  %363 = vmatpush1.msra.mxu0 0.0
  %364 = vmatprep.subr.mxu0 0.0
  %365 = vmatpush1.msra.mxu0 0.0
  %366 = vmatprep.subr.mxu0 0.0
  %367 = vmatpush1.msra.mxu0 0.0
  %368 = vmatprep.subr.mxu0 0.0
  %369 = vmatpush1.msra.mxu0 0.0
  %370 = vmatprep.mubr.f32.mxu0 0.0
  %371 = vmatmul.mubr.f32.gmra.mrb[0].mxu0 %v301
  %v372 = vpop.f32.mrb[0].mxu0
  %v373 = vadd.f32 %v297, %v372
  %v374 = vpop.f32.mrb[0].mxu0
  %375 = vmatprep.mubr.f32.mxu0 0.0
  %376 = vmatmul.mubr.f32.gmra.mrb[0].mxu0 %v304
  %v377 = vpop.f32.mrb[0].mxu0
  %v378 = vadd.f32 %v297, %v377
  %v379 = vpop.f32.mrb[0].mxu0
  %380 = vdwg.mxu0
  %vm381 = vcmp.ge.s32.totalorder %v77, 64
  %vm382 = vcmp.lt.s32.totalorder %v77, 96
  %vm383 = vmand %vm381, %vm382
  %v384 = vsel %vm383, 1.0, 0.5
  %v385 = vsel %vm383, 0.0, 0.5
  %vm386 = vcmask 261120
  %v388 = vsel %vm386, 0.0, 0
  %390 = vmatprep.subr.mxu0 0.0
  %391 = vmatpush1.msra.mxu0 %v36
  %392 = vmatprep.subr.mxu0 0.0
  %393 = vmatpush1.msra.mxu0 %v37
  %394 = vmatprep.subr.mxu0 0.0
  %395 = vmatpush1.msra.mxu0 %v38
  %396 = vmatprep.subr.mxu0 0.0
  %397 = vmatpush1.msra.mxu0 %v39
  %398 = vmatprep.subr.mxu0 0.0
  %399 = vmatpush1.msra.mxu0 0.0
  %400 = vmatprep.subr.mxu0 0.0
  %401 = vmatpush1.msra.mxu0 0.0
  %402 = vmatprep.subr.mxu0 0.0
  %403 = vmatpush1.msra.mxu0 0.0
  %404 = vmatprep.subr.mxu0 0.0
  %405 = vmatpush1.msra.mxu0 0.0
  %406 = vmatprep.subr.mxu0 0.0
  %407 = vmatpush1.msra.mxu0 0.0
  %408 = vmatprep.subr.mxu0 0.0
  %409 = vmatpush1.msra.mxu0 0.0
  %410 = vmatprep.subr.mxu0 0.0
  %411 = vmatpush1.msra.mxu0 0.0
  %412 = vmatprep.subr.mxu0 0.0
  %413 = vmatpush1.msra.mxu0 0.0
  %414 = vmatprep.subr.mxu0 0.0
  %415 = vmatpush1.msra.mxu0 0.0
  %416 = vmatprep.subr.mxu0 0.0
  %417 = vmatpush1.msra.mxu0 0.0
  %418 = vmatprep.subr.mxu0 0.0
  %419 = vmatpush1.msra.mxu0 0.0
  %420 = vmatprep.subr.mxu0 0.0
  %421 = vmatpush1.msra.mxu0 0.0
  %422 = vmatprep.subr.mxu0 0.0
  %423 = vmatpush1.msra.mxu0 0.0
  %424 = vmatprep.subr.mxu0 0.0
  %425 = vmatpush1.msra.mxu0 0.0
  %426 = vmatprep.subr.mxu0 0.0
  %427 = vmatpush1.msra.mxu0 0.0
  %428 = vmatprep.subr.mxu0 0.0
  %429 = vmatpush1.msra.mxu0 0.0
  %430 = vmatprep.subr.mxu0 0.0
  %431 = vmatpush1.msra.mxu0 0.0
  %432 = vmatprep.subr.mxu0 0.0
  %433 = vmatpush1.msra.mxu0 0.0
  %434 = vmatprep.subr.mxu0 0.0
  %435 = vmatpush1.msra.mxu0 0.0
  %436 = vmatprep.subr.mxu0 0.0
  %437 = vmatpush1.msra.mxu0 0.0
  %438 = vmatprep.subr.mxu0 0.0
  %439 = vmatpush1.msra.mxu0 0.0
  %440 = vmatprep.subr.mxu0 0.0
  %441 = vmatpush1.msra.mxu0 0.0
  %442 = vmatprep.subr.mxu0 0.0
  %443 = vmatpush1.msra.mxu0 0.0
  %444 = vmatprep.subr.mxu0 0.0
  %445 = vmatpush1.msra.mxu0 0.0
  %446 = vmatprep.subr.mxu0 0.0
  %447 = vmatpush1.msra.mxu0 0.0
  %448 = vmatprep.subr.mxu0 0.0
  %449 = vmatpush1.msra.mxu0 0.0
  %450 = vmatprep.subr.mxu0 0.0
  %451 = vmatpush1.msra.mxu0 0.0
  %452 = vmatprep.subr.mxu0 0.0
  %453 = vmatpush1.msra.mxu0 0.0
  %454 = vmatprep.mubr.f32.mxu0 0.0
  %455 = vmatmul.mubr.f32.gmra.mrb[0].mxu0 %v388
  %v456 = vpop.f32.mrb[0].mxu0
  %v457 = vadd.f32 0.0, %v456
  %v458 = vpop.f32.mrb[0].mxu0
  %459 = vdwg.mxu0
  %v460 = vadd.f32 %v373, %v457
  %v461 = vmul.f32 %v460, %v384
  %v462 = vtanh.pop %v461
  %v463 = vmul.f32 %v462, %v384
  %v464 = vadd.f32 %v463, %v385
  %v465 = vmul.f32 %v464, 0.0
  %467 = vrot.lane.b32.xlu0 %v464, 64
  %v468 = vpop.permute.xlu0 %467
  %v470 = vmul.f32 %v464, %v468
  %472 = vrot.lane.b32.xlu0 %v470, 32
  %v473 = vpop.permute.xlu0 %472
  %v475 = vadd.f32 %v465, %v473
  %v476 = vtanh.pop %v475
  %478 = vrot.lane.b32.xlu0 %v476, 64
  %v479 = vpop.permute.xlu0 %478
  %v481 = vmul.f32 %v464, %v479
  %483 = vrot.lane.b32.xlu0 %v481, 32
  %v484 = vpop.permute.xlu0 %483
  %vm486 = vcmask 254976
  %487 = vst.msk [vmem:[#allocation2] sm:$0x3] %vm486, %v484
  %v488 = vsel %vm386, %v484, 0
  %490 = vmatprep.subr.mxu0 0.0
  %491 = vmatpush1.msra.mxu0 %v36
  %492 = vmatprep.subr.mxu0 0.0
  %493 = vmatpush1.msra.mxu0 %v37
  %494 = vmatprep.subr.mxu0 0.0
  %495 = vmatpush1.msra.mxu0 %v38
  %496 = vmatprep.subr.mxu0 0.0
  %497 = vmatpush1.msra.mxu0 %v39
  %498 = vmatprep.subr.mxu0 0.0
  %499 = vmatpush1.msra.mxu0 0.0
  %500 = vmatprep.subr.mxu0 0.0
  %501 = vmatpush1.msra.mxu0 0.0
  %502 = vmatprep.subr.mxu0 0.0
  %503 = vmatpush1.msra.mxu0 0.0
  %504 = vmatprep.subr.mxu0 0.0
  %505 = vmatpush1.msra.mxu0 0.0
  %506 = vmatprep.subr.mxu0 0.0
  %507 = vmatpush1.msra.mxu0 0.0
  %508 = vmatprep.subr.mxu0 0.0
  %509 = vmatpush1.msra.mxu0 0.0
  %510 = vmatprep.subr.mxu0 0.0
  %511 = vmatpush1.msra.mxu0 0.0
  %512 = vmatprep.subr.mxu0 0.0
  %513 = vmatpush1.msra.mxu0 0.0
  %514 = vmatprep.subr.mxu0 0.0
  %515 = vmatpush1.msra.mxu0 0.0
  %516 = vmatprep.subr.mxu0 0.0
  %517 = vmatpush1.msra.mxu0 0.0
  %518 = vmatprep.subr.mxu0 0.0
  %519 = vmatpush1.msra.mxu0 0.0
  %520 = vmatprep.subr.mxu0 0.0
  %521 = vmatpush1.msra.mxu0 0.0
  %522 = vmatprep.subr.mxu0 0.0
  %523 = vmatpush1.msra.mxu0 0.0
  %524 = vmatprep.subr.mxu0 0.0
  %525 = vmatpush1.msra.mxu0 0.0
  %526 = vmatprep.subr.mxu0 0.0
  %527 = vmatpush1.msra.mxu0 0.0
  %528 = vmatprep.subr.mxu0 0.0
  %529 = vmatpush1.msra.mxu0 0.0
  %530 = vmatprep.subr.mxu0 0.0
  %531 = vmatpush1.msra.mxu0 0.0
  %532 = vmatprep.subr.mxu0 0.0
  %533 = vmatpush1.msra.mxu0 0.0
  %534 = vmatprep.subr.mxu0 0.0
  %535 = vmatpush1.msra.mxu0 0.0
  %536 = vmatprep.subr.mxu0 0.0
  %537 = vmatpush1.msra.mxu0 0.0
  %538 = vmatprep.subr.mxu0 0.0
  %539 = vmatpush1.msra.mxu0 0.0
  %540 = vmatprep.subr.mxu0 0.0
  %541 = vmatpush1.msra.mxu0 0.0
  %542 = vmatprep.subr.mxu0 0.0
  %543 = vmatpush1.msra.mxu0 0.0
  %544 = vmatprep.subr.mxu0 0.0
  %545 = vmatpush1.msra.mxu0 0.0
  %546 = vmatprep.subr.mxu0 0.0
  %547 = vmatpush1.msra.mxu0 0.0
  %548 = vmatprep.subr.mxu0 0.0
  %549 = vmatpush1.msra.mxu0 0.0
  %550 = vmatprep.subr.mxu0 0.0
  %551 = vmatpush1.msra.mxu0 0.0
  %552 = vmatprep.subr.mxu0 0.0
  %553 = vmatpush1.msra.mxu0 0.0
  %554 = vmatprep.mubr.f32.mxu0 0.0
  %555 = vmatmul.mubr.f32.gmra.mrb[0].mxu0 %v488
  %v556 = vpop.f32.mrb[0].mxu0
  %v557 = vadd.f32 0.0, %v556
  %v558 = vpop.f32.mrb[0].mxu0
  %559 = vdwg.mxu0
  %v561 = vrot.slane %v557, 6
  %v563 = vadd.f32 %v373, %v561
  %v564 = vmul.f32 %v563, %v384
  %v565 = vtanh.pop %v564
  %v566 = vmul.f32 %v565, %v384
  %v567 = vadd.f32 %v566, %v385
  %v569 = vrot.slane %v475, 6
  %v571 = vmul.f32 %v567, %v569
  %573 = vrot.lane.b32.xlu0 %v567, 64
  %v574 = vpop.permute.xlu0 %573
  %v576 = vmul.f32 %v567, %v574
  %578 = vrot.lane.b32.xlu0 %v576, 32
  %v579 = vpop.permute.xlu0 %578
  %v581 = vadd.f32 %v571, %v579
  %v582 = vtanh.pop %v581
  %584 = vrot.lane.b32.xlu0 %v582, 64
  %v585 = vpop.permute.xlu0 %584
  %v587 = vmul.f32 %v567, %v585
  %589 = vrot.lane.b32.xlu0 %v587, 32
  %v590 = vpop.permute.xlu0 %589
  %vm592 = vcmask 257026
  %593 = vst.msk [vmem:[#allocation2] sm:$0xc] %vm592, %v590
  %v594 = vrot.slane %v587, 2
  %595 = vrot.lane.b32.xlu0 %v594, 32
  %v596 = vpop.permute.xlu0 %595
  %v597 = vsel %vm386, %v596, 0
  %599 = vmatprep.subr.mxu0 0.0
  %600 = vmatpush1.msra.mxu0 %v36
  %601 = vmatprep.subr.mxu0 0.0
  %602 = vmatpush1.msra.mxu0 %v37
  %603 = vmatprep.subr.mxu0 0.0
  %604 = vmatpush1.msra.mxu0 %v38
  %605 = vmatprep.subr.mxu0 0.0
  %606 = vmatpush1.msra.mxu0 %v39
  %607 = vmatprep.subr.mxu0 0.0
  %608 = vmatpush1.msra.mxu0 0.0
  %609 = vmatprep.subr.mxu0 0.0
  %610 = vmatpush1.msra.mxu0 0.0
  %611 = vmatprep.subr.mxu0 0.0
  %612 = vmatpush1.msra.mxu0 0.0
  %613 = vmatprep.subr.mxu0 0.0
  %614 = vmatpush1.msra.mxu0 0.0
  %615 = vmatprep.subr.mxu0 0.0
  %616 = vmatpush1.msra.mxu0 0.0
  %617 = vmatprep.subr.mxu0 0.0
  %618 = vmatpush1.msra.mxu0 0.0
  %619 = vmatprep.subr.mxu0 0.0
  %620 = vmatpush1.msra.mxu0 0.0
  %621 = vmatprep.subr.mxu0 0.0
  %622 = vmatpush1.msra.mxu0 0.0
  %623 = vmatprep.subr.mxu0 0.0
  %624 = vmatpush1.msra.mxu0 0.0
  %625 = vmatprep.subr.mxu0 0.0
  %626 = vmatpush1.msra.mxu0 0.0
  %627 = vmatprep.subr.mxu0 0.0
  %628 = vmatpush1.msra.mxu0 0.0
  %629 = vmatprep.subr.mxu0 0.0
  %630 = vmatpush1.msra.mxu0 0.0
  %631 = vmatprep.subr.mxu0 0.0
  %632 = vmatpush1.msra.mxu0 0.0
  %633 = vmatprep.subr.mxu0 0.0
  %634 = vmatpush1.msra.mxu0 0.0
  %635 = vmatprep.subr.mxu0 0.0
  %636 = vmatpush1.msra.mxu0 0.0
  %637 = vmatprep.subr.mxu0 0.0
  %638 = vmatpush1.msra.mxu0 0.0
  %639 = vmatprep.subr.mxu0 0.0
  %640 = vmatpush1.msra.mxu0 0.0
  %641 = vmatprep.subr.mxu0 0.0
  %642 = vmatpush1.msra.mxu0 0.0
  %643 = vmatprep.subr.mxu0 0.0
  %644 = vmatpush1.msra.mxu0 0.0
  %645 = vmatprep.subr.mxu0 0.0
  %646 = vmatpush1.msra.mxu0 0.0
  %647 = vmatprep.subr.mxu0 0.0
  %648 = vmatpush1.msra.mxu0 0.0
  %649 = vmatprep.subr.mxu0 0.0
  %650 = vmatpush1.msra.mxu0 0.0
  %651 = vmatprep.subr.mxu0 0.0
  %652 = vmatpush1.msra.mxu0 0.0
  %653 = vmatprep.subr.mxu0 0.0
  %654 = vmatpush1.msra.mxu0 0.0
  %655 = vmatprep.subr.mxu0 0.0
  %656 = vmatpush1.msra.mxu0 0.0
  %657 = vmatprep.subr.mxu0 0.0
  %658 = vmatpush1.msra.mxu0 0.0
  %659 = vmatprep.subr.mxu0 0.0
  %660 = vmatpush1.msra.mxu0 0.0
  %661 = vmatprep.subr.mxu0 0.0
  %662 = vmatpush1.msra.mxu0 0.0
  %663 = vmatprep.mubr.f32.mxu0 0.0
  %664 = vmatmul.mubr.f32.gmra.mrb[0].mxu0 %v597
  %v665 = vpop.f32.mrb[0].mxu0
  %v666 = vadd.f32 0.0, %v665
  %v667 = vpop.f32.mrb[0].mxu0
  %668 = vdwg.mxu0
  %v670 = vrot.slane %v666, 4
  %v672 = vadd.f32 %v373, %v670
  %v673 = vmul.f32 %v672, %v384
  %v674 = vtanh.pop %v673
  %v675 = vmul.f32 %v674, %v384
  %v676 = vadd.f32 %v675, %v385
  %v678 = vrot.slane %v581, 6
  %v680 = vmul.f32 %v676, %v678
  %682 = vrot.lane.b32.xlu0 %v676, 64
  %v683 = vpop.permute.xlu0 %682
  %v685 = vmul.f32 %v676, %v683
  %687 = vrot.lane.b32.xlu0 %v685, 32
  %v688 = vpop.permute.xlu0 %687
  %v690 = vadd.f32 %v680, %v688
  %v691 = vtanh.pop %v690
  %693 = vrot.lane.b32.xlu0 %v691, 64
  %v694 = vpop.permute.xlu0 %693
  %v696 = vmul.f32 %v676, %v694
  %698 = vrot.lane.b32.xlu0 %v696, 32
  %v699 = vpop.permute.xlu0 %698
  %vm701 = vcmask 259076
  %702 = vst.msk [vmem:[#allocation2] sm:$0x30] %vm701, %v699
  %v703 = vrot.slane %v696, 4
  %704 = vrot.lane.b32.xlu0 %v703, 32
  %v705 = vpop.permute.xlu0 %704
  %v706 = vsel %vm386, %v705, 0
  %708 = vmatprep.subr.mxu0 0.0
  %709 = vmatpush1.msra.mxu0 %v36
  %710 = vmatprep.subr.mxu0 0.0
  %711 = vmatpush1.msra.mxu0 %v37
  %712 = vmatprep.subr.mxu0 0.0
  %713 = vmatpush1.msra.mxu0 %v38
  %714 = vmatprep.subr.mxu0 0.0
  %715 = vmatpush1.msra.mxu0 %v39
  %716 = vmatprep.subr.mxu0 0.0
  %717 = vmatpush1.msra.mxu0 0.0
  %718 = vmatprep.subr.mxu0 0.0
  %719 = vmatpush1.msra.mxu0 0.0
  %720 = vmatprep.subr.mxu0 0.0
  %721 = vmatpush1.msra.mxu0 0.0
  %722 = vmatprep.subr.mxu0 0.0
  %723 = vmatpush1.msra.mxu0 0.0
  %724 = vmatprep.subr.mxu0 0.0
  %725 = vmatpush1.msra.mxu0 0.0
  %726 = vmatprep.subr.mxu0 0.0
  %727 = vmatpush1.msra.mxu0 0.0
  %728 = vmatprep.subr.mxu0 0.0
  %729 = vmatpush1.msra.mxu0 0.0
  %730 = vmatprep.subr.mxu0 0.0
  %731 = vmatpush1.msra.mxu0 0.0
  %732 = vmatprep.subr.mxu0 0.0
  %733 = vmatpush1.msra.mxu0 0.0
  %734 = vmatprep.subr.mxu0 0.0
  %735 = vmatpush1.msra.mxu0 0.0
  %736 = vmatprep.subr.mxu0 0.0
  %737 = vmatpush1.msra.mxu0 0.0
  %738 = vmatprep.subr.mxu0 0.0
  %739 = vmatpush1.msra.mxu0 0.0
  %740 = vmatprep.subr.mxu0 0.0
  %741 = vmatpush1.msra.mxu0 0.0
  %742 = vmatprep.subr.mxu0 0.0
  %743 = vmatpush1.msra.mxu0 0.0
  %744 = vmatprep.subr.mxu0 0.0
  %745 = vmatpush1.msra.mxu0 0.0
  %746 = vmatprep.subr.mxu0 0.0
  %747 = vmatpush1.msra.mxu0 0.0
  %748 = vmatprep.subr.mxu0 0.0
  %749 = vmatpush1.msra.mxu0 0.0
  %750 = vmatprep.subr.mxu0 0.0
  %751 = vmatpush1.msra.mxu0 0.0
  %752 = vmatprep.subr.mxu0 0.0
  %753 = vmatpush1.msra.mxu0 0.0
  %754 = vmatprep.subr.mxu0 0.0
  %755 = vmatpush1.msra.mxu0 0.0
  %756 = vmatprep.subr.mxu0 0.0
  %757 = vmatpush1.msra.mxu0 0.0
  %758 = vmatprep.subr.mxu0 0.0
  %759 = vmatpush1.msra.mxu0 0.0
  %760 = vmatprep.subr.mxu0 0.0
  %761 = vmatpush1.msra.mxu0 0.0
  %762 = vmatprep.subr.mxu0 0.0
  %763 = vmatpush1.msra.mxu0 0.0
  %764 = vmatprep.subr.mxu0 0.0
  %765 = vmatpush1.msra.mxu0 0.0
  %766 = vmatprep.subr.mxu0 0.0
  %767 = vmatpush1.msra.mxu0 0.0
  %768 = vmatprep.subr.mxu0 0.0
  %769 = vmatpush1.msra.mxu0 0.0
  %770 = vmatprep.subr.mxu0 0.0
  %771 = vmatpush1.msra.mxu0 0.0
  %772 = vmatprep.mubr.f32.mxu0 0.0
  %773 = vmatmul.mubr.f32.gmra.mrb[0].mxu0 %v706
  %v774 = vpop.f32.mrb[0].mxu0
  %v775 = vadd.f32 0.0, %v774
  %v776 = vpop.f32.mrb[0].mxu0
  %777 = vdwg.mxu0
  %v779 = vrot.slane %v775, 2
  %v781 = vadd.f32 %v373, %v779
  %v782 = vmul.f32 %v781, %v384
  %v783 = vtanh.pop %v782
  %v784 = vmul.f32 %v783, %v384
  %v785 = vadd.f32 %v784, %v385
  %v787 = vrot.slane %v690, 6
  %v789 = vmul.f32 %v785, %v787
  %791 = vrot.lane.b32.xlu0 %v785, 64
  %v792 = vpop.permute.xlu0 %791
  %v794 = vmul.f32 %v785, %v792
  %796 = vrot.lane.b32.xlu0 %v794, 32
  %v797 = vpop.permute.xlu0 %796
  %v799 = vadd.f32 %v789, %v797
  %v800 = vtanh.pop %v799
  %802 = vrot.lane.b32.xlu0 %v800, 64
  %v803 = vpop.permute.xlu0 %802
  %v805 = vmul.f32 %v785, %v803
  %807 = vrot.lane.b32.xlu0 %v805, 32
  %v808 = vpop.permute.xlu0 %807
  %vm810 = vcmask 261126
  %811 = vst.msk [vmem:[#allocation2] sm:$0xc0] %vm810, %v808
  %v812 = vrot.slane %v805, 6
  %813 = vrot.lane.b32.xlu0 %v812, 32
  %v814 = vpop.permute.xlu0 %813
  %v815 = vsel %vm386, %v814, 0
  %817 = vmatprep.subr.mxu0 0.0
  %818 = vmatpush1.msra.mxu0 %v36
  %819 = vmatprep.subr.mxu0 0.0
  %820 = vmatpush1.msra.mxu0 %v37
  %821 = vmatprep.subr.mxu0 0.0
  %822 = vmatpush1.msra.mxu0 %v38
  %823 = vmatprep.subr.mxu0 0.0
  %824 = vmatpush1.msra.mxu0 %v39
  %825 = vmatprep.subr.mxu0 0.0
  %826 = vmatpush1.msra.mxu0 0.0
  %827 = vmatprep.subr.mxu0 0.0
  %828 = vmatpush1.msra.mxu0 0.0
  %829 = vmatprep.subr.mxu0 0.0
  %830 = vmatpush1.msra.mxu0 0.0
  %831 = vmatprep.subr.mxu0 0.0
  %832 = vmatpush1.msra.mxu0 0.0
  %833 = vmatprep.subr.mxu0 0.0
  %834 = vmatpush1.msra.mxu0 0.0
  %835 = vmatprep.subr.mxu0 0.0
  %836 = vmatpush1.msra.mxu0 0.0
  %837 = vmatprep.subr.mxu0 0.0
  %838 = vmatpush1.msra.mxu0 0.0
  %839 = vmatprep.subr.mxu0 0.0
  %840 = vmatpush1.msra.mxu0 0.0
  %841 = vmatprep.subr.mxu0 0.0
  %842 = vmatpush1.msra.mxu0 0.0
  %843 = vmatprep.subr.mxu0 0.0
  %844 = vmatpush1.msra.mxu0 0.0
  %845 = vmatprep.subr.mxu0 0.0
  %846 = vmatpush1.msra.mxu0 0.0
  %847 = vmatprep.subr.mxu0 0.0
  %848 = vmatpush1.msra.mxu0 0.0
  %849 = vmatprep.subr.mxu0 0.0
  %850 = vmatpush1.msra.mxu0 0.0
  %851 = vmatprep.subr.mxu0 0.0
  %852 = vmatpush1.msra.mxu0 0.0
  %853 = vmatprep.subr.mxu0 0.0
  %854 = vmatpush1.msra.mxu0 0.0
  %855 = vmatprep.subr.mxu0 0.0
  %856 = vmatpush1.msra.mxu0 0.0
  %857 = vmatprep.subr.mxu0 0.0
  %858 = vmatpush1.msra.mxu0 0.0
  %859 = vmatprep.subr.mxu0 0.0
  %860 = vmatpush1.msra.mxu0 0.0
  %861 = vmatprep.subr.mxu0 0.0
  %862 = vmatpush1.msra.mxu0 0.0
  %863 = vmatprep.subr.mxu0 0.0
  %864 = vmatpush1.msra.mxu0 0.0
  %865 = vmatprep.subr.mxu0 0.0
  %866 = vmatpush1.msra.mxu0 0.0
  %867 = vmatprep.subr.mxu0 0.0
  %868 = vmatpush1.msra.mxu0 0.0
  %869 = vmatprep.subr.mxu0 0.0
  %870 = vmatpush1.msra.mxu0 0.0
  %871 = vmatprep.subr.mxu0 0.0
  %872 = vmatpush1.msra.mxu0 0.0
  %873 = vmatprep.subr.mxu0 0.0
  %874 = vmatpush1.msra.mxu0 0.0
  %875 = vmatprep.subr.mxu0 0.0
  %876 = vmatpush1.msra.mxu0 0.0
  %877 = vmatprep.subr.mxu0 0.0
  %878 = vmatpush1.msra.mxu0 0.0
  %879 = vmatprep.subr.mxu0 0.0
  %880 = vmatpush1.msra.mxu0 0.0
  %881 = vmatprep.mubr.f32.mxu0 0.0
  %882 = vmatmul.mubr.f32.gmra.mrb[0].mxu0 %v815
  %v883 = vpop.f32.mrb[0].mxu0
  %v884 = vadd.f32 0.0, %v883
  %v885 = vpop.f32.mrb[0].mxu0
  %886 = vdwg.mxu0
  %v887 = vadd.f32 %v378, %v884
  %v888 = vmul.f32 %v887, %v384
  %v889 = vtanh.pop %v888
  %v890 = vmul.f32 %v889, %v384
  %v891 = vadd.f32 %v890, %v385
  %v893 = vrot.slane %v799, 6
  %v895 = vmul.f32 %v891, %v893
  %897 = vrot.lane.b32.xlu0 %v891, 64
  %v898 = vpop.permute.xlu0 %897
  %v900 = vmul.f32 %v891, %v898
  %902 = vrot.lane.b32.xlu0 %v900, 32
  %v903 = vpop.permute.xlu0 %902
  %v905 = vadd.f32 %v895, %v903
  %v906 = vtanh.pop %v905
  %908 = vrot.lane.b32.xlu0 %v906, 64
  %v909 = vpop.permute.xlu0 %908
  %v911 = vmul.f32 %v891, %v909
  %913 = vrot.lane.b32.xlu0 %v911, 32
  %v914 = vpop.permute.xlu0 %913
  %916 = vst.msk [vmem:[#allocation2 + $0x8] sm:$0x3] %vm486, %v914
  %v917 = vsel %vm386, %v914, 0
  %919 = vmatprep.subr.mxu0 0.0
  %920 = vmatpush1.msra.mxu0 %v36
  %921 = vmatprep.subr.mxu0 0.0
  %922 = vmatpush1.msra.mxu0 %v37
  %923 = vmatprep.subr.mxu0 0.0
  %924 = vmatpush1.msra.mxu0 %v38
  %925 = vmatprep.subr.mxu0 0.0
  %926 = vmatpush1.msra.mxu0 %v39
  %927 = vmatprep.subr.mxu0 0.0
  %928 = vmatpush1.msra.mxu0 0.0
  %929 = vmatprep.subr.mxu0 0.0
  %930 = vmatpush1.msra.mxu0 0.0
  %931 = vmatprep.subr.mxu0 0.0
  %932 = vmatpush1.msra.mxu0 0.0
  %933 = vmatprep.subr.mxu0 0.0
  %934 = vmatpush1.msra.mxu0 0.0
  %935 = vmatprep.subr.mxu0 0.0
  %936 = vmatpush1.msra.mxu0 0.0
  %937 = vmatprep.subr.mxu0 0.0
  %938 = vmatpush1.msra.mxu0 0.0
  %939 = vmatprep.subr.mxu0 0.0
  %940 = vmatpush1.msra.mxu0 0.0
  %941 = vmatprep.subr.mxu0 0.0
  %942 = vmatpush1.msra.mxu0 0.0
  %943 = vmatprep.subr.mxu0 0.0
  %944 = vmatpush1.msra.mxu0 0.0
  %945 = vmatprep.subr.mxu0 0.0
  %946 = vmatpush1.msra.mxu0 0.0
  %947 = vmatprep.subr.mxu0 0.0
  %948 = vmatpush1.msra.mxu0 0.0
  %949 = vmatprep.subr.mxu0 0.0
  %950 = vmatpush1.msra.mxu0 0.0
  %951 = vmatprep.subr.mxu0 0.0
  %952 = vmatpush1.msra.mxu0 0.0
  %953 = vmatprep.subr.mxu0 0.0
  %954 = vmatpush1.msra.mxu0 0.0
  %955 = vmatprep.subr.mxu0 0.0
  %956 = vmatpush1.msra.mxu0 0.0
  %957 = vmatprep.subr.mxu0 0.0
  %958 = vmatpush1.msra.mxu0 0.0
  %959 = vmatprep.subr.mxu0 0.0
  %960 = vmatpush1.msra.mxu0 0.0
  %961 = vmatprep.subr.mxu0 0.0
  %962 = vmatpush1.msra.mxu0 0.0
  %963 = vmatprep.subr.mxu0 0.0
  %964 = vmatpush1.msra.mxu0 0.0
  %965 = vmatprep.subr.mxu0 0.0
  %966 = vmatpush1.msra.mxu0 0.0
  %967 = vmatprep.subr.mxu0 0.0
  %968 = vmatpush1.msra.mxu0 0.0
  %969 = vmatprep.subr.mxu0 0.0
  %970 = vmatpush1.msra.mxu0 0.0
  %971 = vmatprep.subr.mxu0 0.0
  %972 = vmatpush1.msra.mxu0 0.0
  %973 = vmatprep.subr.mxu0 0.0
  %974 = vmatpush1.msra.mxu0 0.0
  %975 = vmatprep.subr.mxu0 0.0
  %976 = vmatpush1.msra.mxu0 0.0
  %977 = vmatprep.subr.mxu0 0.0
  %978 = vmatpush1.msra.mxu0 0.0
  %979 = vmatprep.subr.mxu0 0.0
  %980 = vmatpush1.msra.mxu0 0.0
  %981 = vmatprep.subr.mxu0 0.0
  %982 = vmatpush1.msra.mxu0 0.0
  %983 = vmatprep.mubr.f32.mxu0 0.0
  %984 = vmatmul.mubr.f32.gmra.mrb[0].mxu0 %v917
  %v985 = vpop.f32.mrb[0].mxu0
  %v986 = vadd.f32 0.0, %v985
  %v987 = vpop.f32.mrb[0].mxu0
  %988 = vdwg.mxu0
  %v990 = vrot.slane %v986, 6
  %v992 = vadd.f32 %v378, %v990
  %v993 = vmul.f32 %v992, %v384
  %v994 = vtanh.pop %v993
  %v995 = vmul.f32 %v994, %v384
  %v996 = vadd.f32 %v995, %v385
  %v998 = vrot.slane %v905, 6
  %v1000 = vmul.f32 %v996, %v998
  %1002 = vrot.lane.b32.xlu0 %v996, 64
  %v1003 = vpop.permute.xlu0 %1002
  %v1005 = vmul.f32 %v996, %v1003
  %1007 = vrot.lane.b32.xlu0 %v1005, 32
  %v1008 = vpop.permute.xlu0 %1007
  %v1010 = vadd.f32 %v1000, %v1008
  %v1011 = vtanh.pop %v1010
  %1013 = vrot.lane.b32.xlu0 %v1011, 64
  %v1014 = vpop.permute.xlu0 %1013
  %v1016 = vmul.f32 %v996, %v1014
  %1018 = vrot.lane.b32.xlu0 %v1016, 32
  %v1019 = vpop.permute.xlu0 %1018
  %1021 = vst.msk [vmem:[#allocation2 + $0x8] sm:$0xc] %vm592, %v1019
  %v1022 = vrot.slane %v1016, 2
  %1023 = vrot.lane.b32.xlu0 %v1022, 32
  %v1024 = vpop.permute.xlu0 %1023
  %v1025 = vsel %vm386, %v1024, 0
  %1027 = vmatprep.subr.mxu0 0.0
  %1028 = vmatpush1.msra.mxu0 %v36
  %1029 = vmatprep.subr.mxu0 0.0
  %1030 = vmatpush1.msra.mxu0 %v37
  %1031 = vmatprep.subr.mxu0 0.0
  %1032 = vmatpush1.msra.mxu0 %v38
  %1033 = vmatprep.subr.mxu0 0.0
  %1034 = vmatpush1.msra.mxu0 %v39
  %1035 = vmatprep.subr.mxu0 0.0
  %1036 = vmatpush1.msra.mxu0 0.0
  %1037 = vmatprep.subr.mxu0 0.0
  %1038 = vmatpush1.msra.mxu0 0.0
  %1039 = vmatprep.subr.mxu0 0.0
  %1040 = vmatpush1.msra.mxu0 0.0
  %1041 = vmatprep.subr.mxu0 0.0
  %1042 = vmatpush1.msra.mxu0 0.0
  %1043 = vmatprep.subr.mxu0 0.0
  %1044 = vmatpush1.msra.mxu0 0.0
  %1045 = vmatprep.subr.mxu0 0.0
  %1046 = vmatpush1.msra.mxu0 0.0
  %1047 = vmatprep.subr.mxu0 0.0
  %1048 = vmatpush1.msra.mxu0 0.0
  %1049 = vmatprep.subr.mxu0 0.0
  %1050 = vmatpush1.msra.mxu0 0.0
  %1051 = vmatprep.subr.mxu0 0.0
  %1052 = vmatpush1.msra.mxu0 0.0
  %1053 = vmatprep.subr.mxu0 0.0
  %1054 = vmatpush1.msra.mxu0 0.0
  %1055 = vmatprep.subr.mxu0 0.0
  %1056 = vmatpush1.msra.mxu0 0.0
  %1057 = vmatprep.subr.mxu0 0.0
  %1058 = vmatpush1.msra.mxu0 0.0
  %1059 = vmatprep.subr.mxu0 0.0
  %1060 = vmatpush1.msra.mxu0 0.0
  %1061 = vmatprep.subr.mxu0 0.0
  %1062 = vmatpush1.msra.mxu0 0.0
  %1063 = vmatprep.subr.mxu0 0.0
  %1064 = vmatpush1.msra.mxu0 0.0
  %1065 = vmatprep.subr.mxu0 0.0
  %1066 = vmatpush1.msra.mxu0 0.0
  %1067 = vmatprep.subr.mxu0 0.0
  %1068 = vmatpush1.msra.mxu0 0.0
  %1069 = vmatprep.subr.mxu0 0.0
  %1070 = vmatpush1.msra.mxu0 0.0
  %1071 = vmatprep.subr.mxu0 0.0
  %1072 = vmatpush1.msra.mxu0 0.0
  %1073 = vmatprep.subr.mxu0 0.0
  %1074 = vmatpush1.msra.mxu0 0.0
  %1075 = vmatprep.subr.mxu0 0.0
  %1076 = vmatpush1.msra.mxu0 0.0
  %1077 = vmatprep.subr.mxu0 0.0
  %1078 = vmatpush1.msra.mxu0 0.0
  %1079 = vmatprep.subr.mxu0 0.0
  %1080 = vmatpush1.msra.mxu0 0.0
  %1081 = vmatprep.subr.mxu0 0.0
  %1082 = vmatpush1.msra.mxu0 0.0
  %1083 = vmatprep.subr.mxu0 0.0
  %1084 = vmatpush1.msra.mxu0 0.0
  %1085 = vmatprep.subr.mxu0 0.0
  %1086 = vmatpush1.msra.mxu0 0.0
  %1087 = vmatprep.subr.mxu0 0.0
  %1088 = vmatpush1.msra.mxu0 0.0
  %1089 = vmatprep.subr.mxu0 0.0
  %1090 = vmatpush1.msra.mxu0 0.0
  %1091 = vmatprep.mubr.f32.mxu0 0.0
  %1092 = vmatmul.mubr.f32.gmra.mrb[0].mxu0 %v1025
  %v1093 = vpop.f32.mrb[0].mxu0
  %v1094 = vadd.f32 0.0, %v1093
  %v1095 = vpop.f32.mrb[0].mxu0
  %1096 = vdwg.mxu0
  %v1098 = vrot.slane %v1094, 4
  %v1100 = vadd.f32 %v378, %v1098
  %v1101 = vmul.f32 %v1100, %v384
  %v1102 = vtanh.pop %v1101
  %v1103 = vmul.f32 %v1102, %v384
  %v1104 = vadd.f32 %v1103, %v385
  %v1106 = vrot.slane %v1010, 6
  %v1108 = vmul.f32 %v1104, %v1106
  %1110 = vrot.lane.b32.xlu0 %v1104, 64
  %v1111 = vpop.permute.xlu0 %1110
  %v1113 = vmul.f32 %v1104, %v1111
  %1115 = vrot.lane.b32.xlu0 %v1113, 32
  %v1116 = vpop.permute.xlu0 %1115
  %v1118 = vadd.f32 %v1108, %v1116
  %v1119 = vtanh.pop %v1118
  %1121 = vrot.lane.b32.xlu0 %v1119, 64
  %v1122 = vpop.permute.xlu0 %1121
  %v1124 = vmul.f32 %v1104, %v1122
  %1126 = vrot.lane.b32.xlu0 %v1124, 32
  %v1127 = vpop.permute.xlu0 %1126
  %1129 = vst.msk [vmem:[#allocation2 + $0x8] sm:$0x30] %vm701, %v1127
  %v1130 = vrot.slane %v1124, 4
  %1131 = vrot.lane.b32.xlu0 %v1130, 32
  %v1132 = vpop.permute.xlu0 %1131
  %v1133 = vsel %vm386, %v1132, 0
  %1135 = vmatprep.subr.mxu0 0.0
  %1136 = vmatpush1.msra.mxu0 %v36
  %1137 = vmatprep.subr.mxu0 0.0
  %1138 = vmatpush1.msra.mxu0 %v37
  %1139 = vmatprep.subr.mxu0 0.0
  %1140 = vmatpush1.msra.mxu0 %v38
  %1141 = vmatprep.subr.mxu0 0.0
  %1142 = vmatpush1.msra.mxu0 %v39
  %1143 = vmatprep.subr.mxu0 0.0
  %1144 = vmatpush1.msra.mxu0 0.0
  %1145 = vmatprep.subr.mxu0 0.0
  %1146 = vmatpush1.msra.mxu0 0.0
  %1147 = vmatprep.subr.mxu0 0.0
  %1148 = vmatpush1.msra.mxu0 0.0
  %1149 = vmatprep.subr.mxu0 0.0
  %1150 = vmatpush1.msra.mxu0 0.0
  %1151 = vmatprep.subr.mxu0 0.0
  %1152 = vmatpush1.msra.mxu0 0.0
  %1153 = vmatprep.subr.mxu0 0.0
  %1154 = vmatpush1.msra.mxu0 0.0
  %1155 = vmatprep.subr.mxu0 0.0
  %1156 = vmatpush1.msra.mxu0 0.0
  %1157 = vmatprep.subr.mxu0 0.0
  %1158 = vmatpush1.msra.mxu0 0.0
  %1159 = vmatprep.subr.mxu0 0.0
  %1160 = vmatpush1.msra.mxu0 0.0
  %1161 = vmatprep.subr.mxu0 0.0
  %1162 = vmatpush1.msra.mxu0 0.0
  %1163 = vmatprep.subr.mxu0 0.0
  %1164 = vmatpush1.msra.mxu0 0.0
  %1165 = vmatprep.subr.mxu0 0.0
  %1166 = vmatpush1.msra.mxu0 0.0
  %1167 = vmatprep.subr.mxu0 0.0
  %1168 = vmatpush1.msra.mxu0 0.0
  %1169 = vmatprep.subr.mxu0 0.0
  %1170 = vmatpush1.msra.mxu0 0.0
  %1171 = vmatprep.subr.mxu0 0.0
  %1172 = vmatpush1.msra.mxu0 0.0
  %1173 = vmatprep.subr.mxu0 0.0
  %1174 = vmatpush1.msra.mxu0 0.0
  %1175 = vmatprep.subr.mxu0 0.0
  %1176 = vmatpush1.msra.mxu0 0.0
  %1177 = vmatprep.subr.mxu0 0.0
  %1178 = vmatpush1.msra.mxu0 0.0
  %1179 = vmatprep.subr.mxu0 0.0
  %1180 = vmatpush1.msra.mxu0 0.0
  %1181 = vmatprep.subr.mxu0 0.0
  %1182 = vmatpush1.msra.mxu0 0.0
  %1183 = vmatprep.subr.mxu0 0.0
  %1184 = vmatpush1.msra.mxu0 0.0
  %1185 = vmatprep.subr.mxu0 0.0
  %1186 = vmatpush1.msra.mxu0 0.0
  %1187 = vmatprep.subr.mxu0 0.0
  %1188 = vmatpush1.msra.mxu0 0.0
  %1189 = vmatprep.subr.mxu0 0.0
  %1190 = vmatpush1.msra.mxu0 0.0
  %1191 = vmatprep.subr.mxu0 0.0
  %1192 = vmatpush1.msra.mxu0 0.0
  %1193 = vmatprep.subr.mxu0 0.0
  %1194 = vmatpush1.msra.mxu0 0.0
  %1195 = vmatprep.subr.mxu0 0.0
  %1196 = vmatpush1.msra.mxu0 0.0
  %1197 = vmatprep.subr.mxu0 0.0
  %1198 = vmatpush1.msra.mxu0 0.0
  %1199 = vmatprep.mubr.f32.mxu0 0.0
  %1200 = vmatmul.mubr.f32.gmra.mrb[0].mxu0 %v1133
  %v1201 = vpop.f32.mrb[0].mxu0
  %v1202 = vadd.f32 0.0, %v1201
  %v1203 = vpop.f32.mrb[0].mxu0
  %1204 = vdwg.mxu0
  %v1206 = vrot.slane %v1202, 2
  %v1208 = vadd.f32 %v378, %v1206
  %v1209 = vmul.f32 %v1208, %v384
  %v1210 = vtanh.pop %v1209
  %v1211 = vmul.f32 %v1210, %v384
  %v1212 = vadd.f32 %v1211, %v385
  %v1214 = vrot.slane %v1118, 6
  %v1216 = vmul.f32 %v1212, %v1214
  %1218 = vrot.lane.b32.xlu0 %v1212, 64
  %v1219 = vpop.permute.xlu0 %1218
  %v1221 = vmul.f32 %v1212, %v1219
  %1223 = vrot.lane.b32.xlu0 %v1221, 32
  %v1224 = vpop.permute.xlu0 %1223
  %v1226 = vadd.f32 %v1216, %v1224
  %v1227 = vtanh.pop %v1226
  %1229 = vrot.lane.b32.xlu0 %v1227, 64
  %v1230 = vpop.permute.xlu0 %1229
  %v1232 = vmul.f32 %v1212, %v1230
  %1234 = vrot.lane.b32.xlu0 %v1232, 32
  %v1235 = vpop.permute.xlu0 %1234
  %1237 = vst.msk [vmem:[#allocation2 + $0x8] sm:$0xc0] %vm810, %v1235
  %v1238 = vld [vmem:[#allocation2] sm:$0xff]
  %v1239 = vld [vmem:[#allocation2 + $0x8] sm:$0xff]
  %v1241 = vlaneseq
  %v1242 = vshrl.u32 %v1241, 7
  %v1243 = vsub.s32 0, %v1242
  %v1244 = vrot.slane %v45, %v1243
  %v1247 = vsel %vm386, %v1238, 0
  %v1250 = vsel %vm386, %v1239, 0
  %1252 = vmatprep.subr.mxu0 0.0
  %1253 = vmatpush1.msra.mxu0 %v41
  %1254 = vmatprep.subr.mxu0 0.0
  %1255 = vmatpush1.msra.mxu0 %v42
  %1256 = vmatprep.subr.mxu0 0.0
  %1257 = vmatpush1.msra.mxu0 %v43
  %1258 = vmatprep.subr.mxu0 0.0
  %1259 = vmatpush1.msra.mxu0 %v44
  %1260 = vmatprep.subr.mxu0 0.0
  %1261 = vmatpush1.msra.mxu0 0.0
  %1262 = vmatprep.subr.mxu0 0.0
  %1263 = vmatpush1.msra.mxu0 0.0
  %1264 = vmatprep.subr.mxu0 0.0
  %1265 = vmatpush1.msra.mxu0 0.0
  %1266 = vmatprep.subr.mxu0 0.0
  %1267 = vmatpush1.msra.mxu0 0.0
  %1268 = vmatprep.subr.mxu0 0.0
  %1269 = vmatpush1.msra.mxu0 0.0
  %1270 = vmatprep.subr.mxu0 0.0
  %1271 = vmatpush1.msra.mxu0 0.0
  %1272 = vmatprep.subr.mxu0 0.0
  %1273 = vmatpush1.msra.mxu0 0.0
  %1274 = vmatprep.subr.mxu0 0.0
  %1275 = vmatpush1.msra.mxu0 0.0
  %1276 = vmatprep.subr.mxu0 0.0
  %1277 = vmatpush1.msra.mxu0 0.0
  %1278 = vmatprep.subr.mxu0 0.0
  %1279 = vmatpush1.msra.mxu0 0.0
  %1280 = vmatprep.subr.mxu0 0.0
  %1281 = vmatpush1.msra.mxu0 0.0
  %1282 = vmatprep.subr.mxu0 0.0
  %1283 = vmatpush1.msra.mxu0 0.0
  %1284 = vmatprep.subr.mxu0 0.0
  %1285 = vmatpush1.msra.mxu0 0.0
  %1286 = vmatprep.subr.mxu0 0.0
  %1287 = vmatpush1.msra.mxu0 0.0
  %1288 = vmatprep.subr.mxu0 0.0
  %1289 = vmatpush1.msra.mxu0 0.0
  %1290 = vmatprep.subr.mxu0 0.0
  %1291 = vmatpush1.msra.mxu0 0.0
  %1292 = vmatprep.subr.mxu0 0.0
  %1293 = vmatpush1.msra.mxu0 0.0
  %1294 = vmatprep.subr.mxu0 0.0
  %1295 = vmatpush1.msra.mxu0 0.0
  %1296 = vmatprep.subr.mxu0 0.0
  %1297 = vmatpush1.msra.mxu0 0.0
  %1298 = vmatprep.subr.mxu0 0.0
  %1299 = vmatpush1.msra.mxu0 0.0
  %1300 = vmatprep.subr.mxu0 0.0
  %1301 = vmatpush1.msra.mxu0 0.0
  %1302 = vmatprep.subr.mxu0 0.0
  %1303 = vmatpush1.msra.mxu0 0.0
  %1304 = vmatprep.subr.mxu0 0.0
  %1305 = vmatpush1.msra.mxu0 0.0
  %1306 = vmatprep.subr.mxu0 0.0
  %1307 = vmatpush1.msra.mxu0 0.0
  %1308 = vmatprep.subr.mxu0 0.0
  %1309 = vmatpush1.msra.mxu0 0.0
  %1310 = vmatprep.subr.mxu0 0.0
  %1311 = vmatpush1.msra.mxu0 0.0
  %1312 = vmatprep.subr.mxu0 0.0
  %1313 = vmatpush1.msra.mxu0 0.0
  %1314 = vmatprep.subr.mxu0 0.0
  %1315 = vmatpush1.msra.mxu0 0.0
  %1316 = vmatprep.mubr.f32.mxu0 0.0
  %1317 = vmatmul.mubr.f32.gmra.mrb[0].mxu0 %v1247
  %v1318 = vpop.f32.mrb[0].mxu0
  %v1319 = vadd.f32 %v1244, %v1318
  %v1320 = vpop.f32.mrb[0].mxu0
  %1321 = vmatprep.mubr.f32.mxu0 0.0
  %1322 = vmatmul.mubr.f32.gmra.mrb[0].mxu0 %v1250
  %v1323 = vpop.f32.mrb[0].mxu0
  %v1324 = vadd.f32 %v1244, %v1323
  %v1325 = vpop.f32.mrb[0].mxu0
  %1326 = vdwg.mxu0
  %vm1327 = vcmask 31744
  %1328 = vst.msk [vmem:[%s9] sm:$0xff] %vm1327, %v1319
  %1329 = vst.msk [vmem:[%s9 + $0x8] sm:$0xff] %vm1327, %v1324
  %v1330 = vmul.f32 %v1319, 0.5
  %v1331 = vmul.f32 %v1324, 0.5
  %v1332 = vtanh.pop %v1330
  %v1333 = vtanh.pop %v1331
  %v1334 = vmul.f32 %v1332, 0.5
  %v1335 = vmul.f32 %v1333, 0.5
  %v1336 = vadd.f32 %v1334, 0.5
  %v1337 = vadd.f32 %v1335, 0.5
  %s1338 = scalar_lea.vmem %s9, 16
  %1339 = vst.msk [vmem:[%s1338] sm:$0xff] %vm1327, %v1336
  %1340 = vst.msk [vmem:[%s1338 + $0x8] sm:$0xff] %vm1327, %v1337
  // Predicated region
  $region38: #{lstm_forward.1} parent=0 // pred_check
    _
  $region39: #{lstm_forward.1} parent=0 // pred_check_branch
    %1342 = sbr.rel (0) target = $region41
  $region40: #{lstm_forward.1} parent=0 // pred_region
    _
  $region41: #{lstm_forward.1} parent=0 // pred_fallthru
    _
  // Predicated region
  $region42: #{lstm_forward.1} parent=0 // pred_check
    _
  $region43: #{lstm_forward.1} parent=0 // pred_check_branch
    %1344 = sbr.rel (0) target = $region45
  $region44: #{lstm_forward.1} parent=0 // pred_region
    _
  $region45: #{lstm_forward.1} parent=0 // pred_fallthru
    _

</llo_original>
